<compile_context>
chip_gen: v7x
topology: tpu7x:2x2x1
jax: 0.10.0
libtpu: 0.0.40
codegen_flags: <defaults>
</compile_context>

<pallas_src>
import functools

import jax
import jax.numpy as jnp
from jax.experimental import pallas as pl
from jax.experimental.pallas import tpu as pltpu


# ----------------------------------------------------------------------------
# Pallas kernel: full forward for one batch element per grid step.
# ----------------------------------------------------------------------------
def _duration_predictor_kernel(
    x_ref,                             # [1, Cin, T]   raw input (NCT)
    m_ref,                             # [1, 1, T]     mask (time on lanes)
    w1_ref, b1_ref, g1_ref, be1_ref,   # [K, H, Cin], [H,1], [H,1], [H,1]
    w2_ref, b2_ref, g2_ref, be2_ref,   # [K, H, H],   [H,1], [H,1], [H,1]
    wp_ref, bp_ref,                    # [1, H], [1, 1]
    o_ref,                             # [1, 1, T]
    *, kernel_size, eps, compute_dtype):
  pad = kernel_size // 2
  T = x_ref.shape[2]

  m = m_ref[0]                                     # [1, T] f32
  cols = jax.lax.broadcasted_iota(jnp.int32, (1, T), 1)   # lane positions

  def conv_taps(hm, w_ref):
    # "same"-padded conv over time (lane axis): XLU rolls + MXU tap-matmuls.
    acc = None
    for d in range(kernel_size):                   # static unroll over taps
      s = pad - d                                  # tap_d[:, t] = hm[:, t + d - pad]
      if s == 0:
        tap = hm
      else:
        rolled = pltpu.roll(hm, shift=s % T, axis=1)
        valid = (cols >= s) if s > 0 else (cols < T + s)
        tap = jnp.where(valid, rolled, 0.0)        # zero "same" padding
      y = jnp.dot(w_ref[d], tap, preferred_element_type=jnp.float32)
      acc = y if acc is None else acc + y
    return acc                                     # [H, T] f32

  def relu_norm(h, b_ref, g_ref, be_ref):
    # bias -> relu -> Glow-TTS LayerNorm over the channel (sublane) axis.
    h = jnp.maximum(h + b_ref[...], 0.0)
    n = h.shape[0]
    mean = jnp.sum(h, axis=0, keepdims=True) * (1.0 / n)        # [1, T]
    mean_sq = jnp.sum(h * h, axis=0, keepdims=True) * (1.0 / n)
    var = mean_sq - mean * mean                    # single-pass variance
    h = (h - mean) * jax.lax.rsqrt(var + eps)
    # dropout: identity at inference  TODO(synk): training-mode dropout
    return h * g_ref[...] + be_ref[...]

  # ---- layer 1: conv_1 on the masked raw input ----------------------------
  xm = (x_ref[0] * m).astype(compute_dtype)        # [Cin, T] masked
  h = relu_norm(conv_taps(xm, w1_ref), b1_ref, g1_ref, be1_ref)

  # ---- layer 2: conv_2 (activations never leave vregs/VMEM) ----------------
  hm = (h * m).astype(compute_dtype)               # [H, T] masked
  h = relu_norm(conv_taps(hm, w2_ref), b2_ref, g2_ref, be2_ref)

  # ---- 1x1 projection, lane-dense [1, T] output ----------------------------
  hm = h * m                                       # [H, T] f32
  out = jnp.dot(wp_ref[...], hm, preferred_element_type=jnp.float32)  # [1, T]
  out = (out + bp_ref[...]) * m                    # bias + final mask
  o_ref[0] = out.astype(o_ref.dtype)


# ----------------------------------------------------------------------------
# JAX wrapper: weight packing + grid/BlockSpecs (no activation layout ops).
# ----------------------------------------------------------------------------
def duration_predictor_pallas(x, x_mask, params, kernel_size, eps=1e-4,
                              compute_dtype=jnp.float32):
  """Glow-TTS DurationPredictor forward.

  x: [B, Cin, T] float, x_mask: [B, 1, T] float -> [B, 1, T] float32.
  `params` uses PyTorch parameter layouts (Conv1d weight = [Cout, Cin, K]).
  """
  B, Cin, T = x.shape
  K = kernel_size
  H = params["w1"].shape[0]

  x = x.astype(jnp.float32)
  mask = x_mask.astype(jnp.float32)                         # [B, 1, T]

  # Weights: torch Conv1d [Cout, Cin, K] -> tap-major [K, Cout, Cin].
  w1 = jnp.transpose(params["w1"], (2, 0, 1)).astype(compute_dtype)  # [K, H, Cin]
  w2 = jnp.transpose(params["w2"], (2, 0, 1)).astype(compute_dtype)  # [K, H, H]
  wp = params["wp"][:, :, 0].astype(jnp.float32)            # [1, H]
  col = lambda v: v.reshape(H, 1).astype(jnp.float32)       # channels on sublanes
  b1, g1, be1 = col(params["b1"]), col(params["g1"]), col(params["be1"])
  b2, g2, be2 = col(params["b2"]), col(params["g2"]), col(params["be2"])
  bp = params["bp"].reshape(1, 1).astype(jnp.float32)

  def full_spec(shape):
    # Weights/biases: constant block index -> DMA'd once, resident in VMEM.
    return pl.BlockSpec(shape, lambda b, n=len(shape): (0,) * n)

  kernel = functools.partial(_duration_predictor_kernel, kernel_size=K,
                             eps=eps, compute_dtype=compute_dtype)

  grid_spec = pltpu.PrefetchScalarGridSpec(
      num_scalar_prefetch=0,
      grid=(B,),
      in_specs=[
          pl.BlockSpec((1, Cin, T), lambda b: (b, 0, 0)),   # x (native NCT)
          pl.BlockSpec((1, 1, T), lambda b: (b, 0, 0)),     # mask [1, T]
          full_spec((K, H, Cin)),                           # w1 tap-major
          full_spec((H, 1)), full_spec((H, 1)), full_spec((H, 1)),
          full_spec((K, H, H)),                             # w2 tap-major
          full_spec((H, 1)), full_spec((H, 1)), full_spec((H, 1)),
          full_spec((1, H)),                                # wp
          full_spec((1, 1)),                                # bp
      ],
      out_specs=pl.BlockSpec((1, 1, T), lambda b: (b, 0, 0)),
  )

  # TODO(synk): for very long T on v7x (64 MiB VMEM) add a T-tiling grid axis
  # with a 2*pad halo; at typical duration-predictor sizes the whole [H, T]
  # slab fits comfortably in scoped VMEM.
  return pl.pallas_call(
      kernel,
      out_shape=jax.ShapeDtypeStruct((B, 1, T), jnp.float32),
      grid_spec=grid_spec,
      compiler_params=pltpu.CompilerParams(
          dimension_semantics=("parallel",)),
  )(x, mask, w1, b1, g1, be1, w2, b2, g2, be2, wp, bp)


# ----------------------------------------------------------------------------
# Pure-JAX reference (mirrors the PyTorch forward, NCT layout).
# ----------------------------------------------------------------------------
def duration_predictor_ref(x, x_mask, params, kernel_size, eps=1e-4):
  pad = kernel_size // 2

  def conv1d(h, w, b, p):
    y = jax.lax.conv_general_dilated(
        h, w, window_strides=(1,), padding=[(p, p)],
        dimension_numbers=("NCH", "OIH", "NCH"))
    return y + b[None, :, None]

  def layer_norm(h, g, be):
    mean = jnp.mean(h, axis=1, keepdims=True)
    var = jnp.mean((h - mean) ** 2, axis=1, keepdims=True)
    h = (h - mean) * jax.lax.rsqrt(var + eps)
    return h * g[None, :, None] + be[None, :, None]

  h = conv1d(x * x_mask, params["w1"], params["b1"], pad)
  h = layer_norm(jax.nn.relu(h), params["g1"], params["be1"])
  h = conv1d(h * x_mask, params["w2"], params["b2"], pad)
  h = layer_norm(jax.nn.relu(h), params["g2"], params["be2"])
  h = conv1d(h * x_mask, params["wp"], params["bp"], 0)
  return h * x_mask


# ----------------------------------------------------------------------------
if __name__ == "__main__":
  B, Cin, H, T, K = 2, 4, 32, 16, 3
  dropout_p = 0.1  # inference: dropout is identity

  key = jax.random.PRNGKey(0)
  keys = jax.random.split(key, 12)

  # Deterministic synthetic parameters (torch Conv1d weight layout [Cout,Cin,K]).
  params = {
      "w1": 0.1 * jax.random.normal(keys[0], (H, Cin, K), jnp.float32),
      "b1": 0.1 * jax.random.normal(keys[1], (H,), jnp.float32),
      "g1": 0.1 + 0.01 * jax.random.normal(keys[2], (H,), jnp.float32),
      "be1": 0.01 * jax.random.normal(keys[3], (H,), jnp.float32),
      "w2": 0.1 * jax.random.normal(keys[4], (H, H, K), jnp.float32),
      "b2": 0.1 * jax.random.normal(keys[5], (H,), jnp.float32),
      "g2": 0.1 + 0.01 * jax.random.normal(keys[6], (H,), jnp.float32),
      "be2": 0.01 * jax.random.normal(keys[7], (H,), jnp.float32),
      "wp": 0.1 * jax.random.normal(keys[8], (1, H, 1), jnp.float32),
      "bp": 0.1 * jax.random.normal(keys[9], (1,), jnp.float32),
  }

  # Inputs: x [B, C, T], x_mask [B, 1, T] (second sample padded after t=12).
  x = jax.random.normal(keys[10], (B, Cin, T), jnp.float32)
  lengths = jnp.array([T, 12], jnp.int32)
  x_mask = (jnp.arange(T)[None, None, :] < lengths[:, None, None]).astype(jnp.float32)

  ref = duration_predictor_ref(x, x_mask, params, kernel_size=K)

  # float32 path: tight check against the pure-JAX reference.
  out = duration_predictor_pallas(x, x_mask, params, kernel_size=K)
  out = jax.block_until_ready(out)
  assert out.shape == (B, 1, T)
  err = jnp.max(jnp.abs(out - ref))
  assert jnp.allclose(out, ref, rtol=1e-3, atol=5e-4), f"f32 max abs diff {err}"

  # bfloat16 matmul path (v6e/v7x fast path): loose numerical check.
  out_bf16 = duration_predictor_pallas(x, x_mask, params, kernel_size=K,
                                       compute_dtype=jnp.bfloat16)
  out_bf16 = jax.block_until_ready(out_bf16)
  err_bf16 = jnp.max(jnp.abs(out_bf16 - ref))
  assert bool(jnp.isfinite(err_bf16)) and float(err_bf16) < 5e-2, (
      f"bf16 max abs diff {err_bf16}")

  print("KERNEL_OK")
</pallas_src>

<mosaic_0001>
module attributes {stable_mosaic.version = 11 : i64} {
  func.func @_duration_predictor_kernel(%arg0: i32, %arg1: memref<1x4x16xf32, #tpu.memory_space<vmem>>, %arg2: memref<1x1x16xf32, #tpu.memory_space<vmem>>, %arg3: memref<3x32x4xf32, #tpu.memory_space<vmem>>, %arg4: memref<32x1xf32, #tpu.memory_space<vmem>>, %arg5: memref<32x1xf32, #tpu.memory_space<vmem>>, %arg6: memref<32x1xf32, #tpu.memory_space<vmem>>, %arg7: memref<3x32x32xf32, #tpu.memory_space<vmem>>, %arg8: memref<32x1xf32, #tpu.memory_space<vmem>>, %arg9: memref<32x1xf32, #tpu.memory_space<vmem>>, %arg10: memref<32x1xf32, #tpu.memory_space<vmem>>, %arg11: memref<1x32xf32, #tpu.memory_space<vmem>>, %arg12: memref<1x1xf32, #tpu.memory_space<vmem>>, %arg13: memref<1x1x16xf32, #tpu.memory_space<vmem>>) attributes {dimension_semantics = [#tpu.dimension_semantics<parallel>], iteration_bounds = array<i64: 2>, scalar_prefetch = 0 : i64, scratch_operands = 0 : i64, tpu.core_type = #tpu.core_type<tc>, window_params = [{transform_indices = @transform_0, window_bounds = array<i64: 1, 4, 16>}, {transform_indices = @transform_1, window_bounds = array<i64: 1, 1, 16>}, {pipeline_mode = #tpu.pipeline_mode<synchronous>, transform_indices = @transform_2, window_bounds = array<i64: 3, 32, 4>}, {pipeline_mode = #tpu.pipeline_mode<synchronous>, transform_indices = @transform_3, window_bounds = array<i64: 32, 1>}, {pipeline_mode = #tpu.pipeline_mode<synchronous>, transform_indices = @transform_4, window_bounds = array<i64: 32, 1>}, {pipeline_mode = #tpu.pipeline_mode<synchronous>, transform_indices = @transform_5, window_bounds = array<i64: 32, 1>}, {pipeline_mode = #tpu.pipeline_mode<synchronous>, transform_indices = @transform_6, window_bounds = array<i64: 3, 32, 32>}, {pipeline_mode = #tpu.pipeline_mode<synchronous>, transform_indices = @transform_7, window_bounds = array<i64: 32, 1>}, {pipeline_mode = #tpu.pipeline_mode<synchronous>, transform_indices = @transform_8, window_bounds = array<i64: 32, 1>}, {pipeline_mode = #tpu.pipeline_mode<synchronous>, transform_indices = @transform_9, window_bounds = array<i64: 32, 1>}, {pipeline_mode = #tpu.pipeline_mode<synchronous>, transform_indices = @transform_10, window_bounds = array<i64: 1, 32>}, {pipeline_mode = #tpu.pipeline_mode<synchronous>, transform_indices = @transform_11, window_bounds = array<i64: 1, 1>}, {transform_indices = @transform_12, window_bounds = array<i64: 1, 1, 16>}]} {
    %c0 = arith.constant 0 : index
    %c0_0 = arith.constant 0 : index
    %c0_1 = arith.constant 0 : index
    %0 = vector.load %arg2[%c0, %c0_0, %c0_1] : memref<1x1x16xf32, #tpu.memory_space<vmem>>, vector<1x1x16xf32>
    %1 = vector.shape_cast %0 : vector<1x1x16xf32> to vector<1x16xf32>
    %2 = tpu.iota {dimensions = array<i32: 1>} : vector<1x16xi32>
    %c0_2 = arith.constant 0 : index
    %c0_3 = arith.constant 0 : index
    %c0_4 = arith.constant 0 : index
    %3 = vector.load %arg1[%c0_2, %c0_3, %c0_4] : memref<1x4x16xf32, #tpu.memory_space<vmem>>, vector<1x4x16xf32>
    %4 = vector.shape_cast %3 : vector<1x4x16xf32> to vector<4x16xf32>
    %5 = vector.broadcast %1 : vector<1x16xf32> to vector<4x16xf32>
    %6 = arith.mulf %4, %5 : vector<4x16xf32>
    %c1_i32 = arith.constant 1 : i32
    %7 = tpu.dynamic_rotate %6 by %c1_i32 dim 1 : vector<4x16xf32>, i32 -> vector<4x16xf32>
    %c1_i32_5 = arith.constant 1 : i32
    %8 = vector.broadcast %c1_i32_5 : i32 to vector<1x16xi32>
    %9 = arith.cmpi sge, %2, %8 : vector<1x16xi32>
    %cst = arith.constant 0.000000e+00 : f32
    %10 = vector.shape_cast %9 : vector<1x16xi1> to vector<1x16xi1>
    %11 = vector.broadcast %10 : vector<1x16xi1> to vector<4x16xi1>
    %12 = vector.broadcast %cst : f32 to vector<4x16xf32>
    %13 = arith.select %11, %7, %12 : vector<4x16xi1>, vector<4x16xf32>
    %c0_6 = arith.constant 0 : index
    %c0_7 = arith.constant 0 : index
    %c0_8 = arith.constant 0 : index
    %14 = vector.load %arg3[%c0_6, %c0_7, %c0_8] : memref<3x32x4xf32, #tpu.memory_space<vmem>>, vector<1x32x4xf32>
    %15 = vector.shape_cast %14 : vector<1x32x4xf32> to vector<32x4xf32>
    %cst_9 = arith.constant dense<0.000000e+00> : vector<32x16xf32>
    %16 = tpu.matmul %15, %13, %cst_9 {dimension_numbers = #tpu.dot_dimension_numbers<[1], [0], [0], [1], [0, 0, 1, 1], [], []>} : vector<32x4xf32>, vector<4x16xf32>, vector<32x16xf32> -> vector<32x16xf32>
    %c1 = arith.constant 1 : index
    %c0_10 = arith.constant 0 : index
    %c0_11 = arith.constant 0 : index
    %17 = vector.load %arg3[%c1, %c0_10, %c0_11] : memref<3x32x4xf32, #tpu.memory_space<vmem>>, vector<1x32x4xf32>
    %18 = vector.shape_cast %17 : vector<1x32x4xf32> to vector<32x4xf32>
    %cst_12 = arith.constant dense<0.000000e+00> : vector<32x16xf32>
    %19 = tpu.matmul %18, %6, %cst_12 {dimension_numbers = #tpu.dot_dimension_numbers<[1], [0], [0], [1], [0, 0, 1, 1], [], []>} : vector<32x4xf32>, vector<4x16xf32>, vector<32x16xf32> -> vector<32x16xf32>
    %20 = arith.addf %16, %19 : vector<32x16xf32>
    %c15_i32 = arith.constant 15 : i32
    %21 = tpu.dynamic_rotate %6 by %c15_i32 dim 1 : vector<4x16xf32>, i32 -> vector<4x16xf32>
    %c15_i32_13 = arith.constant 15 : i32
    %22 = vector.broadcast %c15_i32_13 : i32 to vector<1x16xi32>
    %23 = arith.cmpi slt, %2, %22 : vector<1x16xi32>
    %cst_14 = arith.constant 0.000000e+00 : f32
    %24 = vector.shape_cast %23 : vector<1x16xi1> to vector<1x16xi1>
    %25 = vector.broadcast %24 : vector<1x16xi1> to vector<4x16xi1>
    %26 = vector.broadcast %cst_14 : f32 to vector<4x16xf32>
    %27 = arith.select %25, %21, %26 : vector<4x16xi1>, vector<4x16xf32>
    %c2 = arith.constant 2 : index
    %c0_15 = arith.constant 0 : index
    %c0_16 = arith.constant 0 : index
    %28 = vector.load %arg3[%c2, %c0_15, %c0_16] : memref<3x32x4xf32, #tpu.memory_space<vmem>>, vector<1x32x4xf32>
    %29 = vector.shape_cast %28 : vector<1x32x4xf32> to vector<32x4xf32>
    %cst_17 = arith.constant dense<0.000000e+00> : vector<32x16xf32>
    %30 = tpu.matmul %29, %27, %cst_17 {dimension_numbers = #tpu.dot_dimension_numbers<[1], [0], [0], [1], [0, 0, 1, 1], [], []>} : vector<32x4xf32>, vector<4x16xf32>, vector<32x16xf32> -> vector<32x16xf32>
    %31 = arith.addf %20, %30 : vector<32x16xf32>
    %c0_18 = arith.constant 0 : index
    %c0_19 = arith.constant 0 : index
    %32 = vector.load %arg4[%c0_18, %c0_19] : memref<32x1xf32, #tpu.memory_space<vmem>>, vector<32x1xf32>
    %33 = vector.broadcast %32 : vector<32x1xf32> to vector<32x16xf32>
    %34 = arith.addf %31, %33 : vector<32x16xf32>
    %cst_20 = arith.constant 0.000000e+00 : f32
    %35 = vector.broadcast %cst_20 : f32 to vector<32x16xf32>
    %36 = arith.maximumf %34, %35 : vector<32x16xf32>
    %cst_21 = arith.constant dense<0.000000e+00> : vector<16xf32>
    %37 = vector.multi_reduction <add>, %36, %cst_21 [0] : vector<32x16xf32> to vector<16xf32>
    %38 = vector.shape_cast %37 : vector<16xf32> to vector<1x16xf32>
    %cst_22 = arith.constant 3.125000e-02 : f32
    %39 = vector.broadcast %cst_22 : f32 to vector<1x16xf32>
    %40 = arith.mulf %38, %39 : vector<1x16xf32>
    %41 = arith.mulf %36, %36 : vector<32x16xf32>
    %cst_23 = arith.constant dense<0.000000e+00> : vector<16xf32>
    %42 = vector.multi_reduction <add>, %41, %cst_23 [0] : vector<32x16xf32> to vector<16xf32>
    %43 = vector.shape_cast %42 : vector<16xf32> to vector<1x16xf32>
    %cst_24 = arith.constant 3.125000e-02 : f32
    %44 = vector.broadcast %cst_24 : f32 to vector<1x16xf32>
    %45 = arith.mulf %43, %44 : vector<1x16xf32>
    %46 = arith.mulf %40, %40 : vector<1x16xf32>
    %47 = arith.subf %45, %46 : vector<1x16xf32>
    %48 = vector.broadcast %40 : vector<1x16xf32> to vector<32x16xf32>
    %49 = arith.subf %36, %48 : vector<32x16xf32>
    %cst_25 = arith.constant 9.99999974E-5 : f32
    %50 = vector.broadcast %cst_25 : f32 to vector<1x16xf32>
    %51 = arith.addf %47, %50 : vector<1x16xf32>
    %52 = math.rsqrt %51 : vector<1x16xf32>
    %53 = vector.broadcast %52 : vector<1x16xf32> to vector<32x16xf32>
    %54 = arith.mulf %49, %53 : vector<32x16xf32>
    %c0_26 = arith.constant 0 : index
    %c0_27 = arith.constant 0 : index
    %55 = vector.load %arg5[%c0_26, %c0_27] : memref<32x1xf32, #tpu.memory_space<vmem>>, vector<32x1xf32>
    %56 = vector.broadcast %55 : vector<32x1xf32> to vector<32x16xf32>
    %57 = arith.mulf %54, %56 : vector<32x16xf32>
    %c0_28 = arith.constant 0 : index
    %c0_29 = arith.constant 0 : index
    %58 = vector.load %arg6[%c0_28, %c0_29] : memref<32x1xf32, #tpu.memory_space<vmem>>, vector<32x1xf32>
    %59 = vector.broadcast %58 : vector<32x1xf32> to vector<32x16xf32>
    %60 = arith.addf %57, %59 : vector<32x16xf32>
    %61 = vector.broadcast %1 : vector<1x16xf32> to vector<32x16xf32>
    %62 = arith.mulf %60, %61 : vector<32x16xf32>
    %c1_i32_30 = arith.constant 1 : i32
    %63 = tpu.dynamic_rotate %62 by %c1_i32_30 dim 1 : vector<32x16xf32>, i32 -> vector<32x16xf32>
    %c1_i32_31 = arith.constant 1 : i32
    %64 = vector.broadcast %c1_i32_31 : i32 to vector<1x16xi32>
    %65 = arith.cmpi sge, %2, %64 : vector<1x16xi32>
    %cst_32 = arith.constant 0.000000e+00 : f32
    %66 = vector.shape_cast %65 : vector<1x16xi1> to vector<1x16xi1>
    %67 = vector.broadcast %66 : vector<1x16xi1> to vector<32x16xi1>
    %68 = vector.broadcast %cst_32 : f32 to vector<32x16xf32>
    %69 = arith.select %67, %63, %68 : vector<32x16xi1>, vector<32x16xf32>
    %c0_33 = arith.constant 0 : index
    %c0_34 = arith.constant 0 : index
    %c0_35 = arith.constant 0 : index
    %70 = vector.load %arg7[%c0_33, %c0_34, %c0_35] : memref<3x32x32xf32, #tpu.memory_space<vmem>>, vector<1x32x32xf32>
    %71 = vector.shape_cast %70 : vector<1x32x32xf32> to vector<32x32xf32>
    %cst_36 = arith.constant dense<0.000000e+00> : vector<32x16xf32>
    %72 = tpu.matmul %71, %69, %cst_36 {dimension_numbers = #tpu.dot_dimension_numbers<[1], [0], [0], [1], [0, 0, 1, 1], [], []>} : vector<32x32xf32>, vector<32x16xf32>, vector<32x16xf32> -> vector<32x16xf32>
    %c1_37 = arith.constant 1 : index
    %c0_38 = arith.constant 0 : index
    %c0_39 = arith.constant 0 : index
    %73 = vector.load %arg7[%c1_37, %c0_38, %c0_39] : memref<3x32x32xf32, #tpu.memory_space<vmem>>, vector<1x32x32xf32>
    %74 = vector.shape_cast %73 : vector<1x32x32xf32> to vector<32x32xf32>
    %cst_40 = arith.constant dense<0.000000e+00> : vector<32x16xf32>
    %75 = tpu.matmul %74, %62, %cst_40 {dimension_numbers = #tpu.dot_dimension_numbers<[1], [0], [0], [1], [0, 0, 1, 1], [], []>} : vector<32x32xf32>, vector<32x16xf32>, vector<32x16xf32> -> vector<32x16xf32>
    %76 = arith.addf %72, %75 : vector<32x16xf32>
    %c15_i32_41 = arith.constant 15 : i32
    %77 = tpu.dynamic_rotate %62 by %c15_i32_41 dim 1 : vector<32x16xf32>, i32 -> vector<32x16xf32>
    %c15_i32_42 = arith.constant 15 : i32
    %78 = vector.broadcast %c15_i32_42 : i32 to vector<1x16xi32>
    %79 = arith.cmpi slt, %2, %78 : vector<1x16xi32>
    %cst_43 = arith.constant 0.000000e+00 : f32
    %80 = vector.shape_cast %79 : vector<1x16xi1> to vector<1x16xi1>
    %81 = vector.broadcast %80 : vector<1x16xi1> to vector<32x16xi1>
    %82 = vector.broadcast %cst_43 : f32 to vector<32x16xf32>
    %83 = arith.select %81, %77, %82 : vector<32x16xi1>, vector<32x16xf32>
    %c2_44 = arith.constant 2 : index
    %c0_45 = arith.constant 0 : index
    %c0_46 = arith.constant 0 : index
    %84 = vector.load %arg7[%c2_44, %c0_45, %c0_46] : memref<3x32x32xf32, #tpu.memory_space<vmem>>, vector<1x32x32xf32>
    %85 = vector.shape_cast %84 : vector<1x32x32xf32> to vector<32x32xf32>
    %cst_47 = arith.constant dense<0.000000e+00> : vector<32x16xf32>
    %86 = tpu.matmul %85, %83, %cst_47 {dimension_numbers = #tpu.dot_dimension_numbers<[1], [0], [0], [1], [0, 0, 1, 1], [], []>} : vector<32x32xf32>, vector<32x16xf32>, vector<32x16xf32> -> vector<32x16xf32>
    %87 = arith.addf %76, %86 : vector<32x16xf32>
    %c0_48 = arith.constant 0 : index
    %c0_49 = arith.constant 0 : index
    %88 = vector.load %arg8[%c0_48, %c0_49] : memref<32x1xf32, #tpu.memory_space<vmem>>, vector<32x1xf32>
    %89 = vector.broadcast %88 : vector<32x1xf32> to vector<32x16xf32>
    %90 = arith.addf %87, %89 : vector<32x16xf32>
    %cst_50 = arith.constant 0.000000e+00 : f32
    %91 = vector.broadcast %cst_50 : f32 to vector<32x16xf32>
    %92 = arith.maximumf %90, %91 : vector<32x16xf32>
    %cst_51 = arith.constant dense<0.000000e+00> : vector<16xf32>
    %93 = vector.multi_reduction <add>, %92, %cst_51 [0] : vector<32x16xf32> to vector<16xf32>
    %94 = vector.shape_cast %93 : vector<16xf32> to vector<1x16xf32>
    %cst_52 = arith.constant 3.125000e-02 : f32
    %95 = vector.broadcast %cst_52 : f32 to vector<1x16xf32>
    %96 = arith.mulf %94, %95 : vector<1x16xf32>
    %97 = arith.mulf %92, %92 : vector<32x16xf32>
    %cst_53 = arith.constant dense<0.000000e+00> : vector<16xf32>
    %98 = vector.multi_reduction <add>, %97, %cst_53 [0] : vector<32x16xf32> to vector<16xf32>
    %99 = vector.shape_cast %98 : vector<16xf32> to vector<1x16xf32>
    %cst_54 = arith.constant 3.125000e-02 : f32
    %100 = vector.broadcast %cst_54 : f32 to vector<1x16xf32>
    %101 = arith.mulf %99, %100 : vector<1x16xf32>
    %102 = arith.mulf %96, %96 : vector<1x16xf32>
    %103 = arith.subf %101, %102 : vector<1x16xf32>
    %104 = vector.broadcast %96 : vector<1x16xf32> to vector<32x16xf32>
    %105 = arith.subf %92, %104 : vector<32x16xf32>
    %cst_55 = arith.constant 9.99999974E-5 : f32
    %106 = vector.broadcast %cst_55 : f32 to vector<1x16xf32>
    %107 = arith.addf %103, %106 : vector<1x16xf32>
    %108 = math.rsqrt %107 : vector<1x16xf32>
    %109 = vector.broadcast %108 : vector<1x16xf32> to vector<32x16xf32>
    %110 = arith.mulf %105, %109 : vector<32x16xf32>
    %c0_56 = arith.constant 0 : index
    %c0_57 = arith.constant 0 : index
    %111 = vector.load %arg9[%c0_56, %c0_57] : memref<32x1xf32, #tpu.memory_space<vmem>>, vector<32x1xf32>
    %112 = vector.broadcast %111 : vector<32x1xf32> to vector<32x16xf32>
    %113 = arith.mulf %110, %112 : vector<32x16xf32>
    %c0_58 = arith.constant 0 : index
    %c0_59 = arith.constant 0 : index
    %114 = vector.load %arg10[%c0_58, %c0_59] : memref<32x1xf32, #tpu.memory_space<vmem>>, vector<32x1xf32>
    %115 = vector.broadcast %114 : vector<32x1xf32> to vector<32x16xf32>
    %116 = arith.addf %113, %115 : vector<32x16xf32>
    %117 = vector.broadcast %1 : vector<1x16xf32> to vector<32x16xf32>
    %118 = arith.mulf %116, %117 : vector<32x16xf32>
    %c0_60 = arith.constant 0 : index
    %c0_61 = arith.constant 0 : index
    %119 = vector.load %arg11[%c0_60, %c0_61] : memref<1x32xf32, #tpu.memory_space<vmem>>, vector<1x32xf32>
    %cst_62 = arith.constant dense<0.000000e+00> : vector<1x16xf32>
    %120 = tpu.matmul %119, %118, %cst_62 {dimension_numbers = #tpu.dot_dimension_numbers<[1], [0], [0], [1], [0, 0, 1, 1], [], []>} : vector<1x32xf32>, vector<32x16xf32>, vector<1x16xf32> -> vector<1x16xf32>
    %c0_63 = arith.constant 0 : index
    %c0_64 = arith.constant 0 : index
    %121 = vector.load %arg12[%c0_63, %c0_64] : memref<1x1xf32, #tpu.memory_space<vmem>>, vector<1x1xf32>
    %122 = vector.broadcast %121 : vector<1x1xf32> to vector<1x16xf32>
    %123 = arith.addf %120, %122 : vector<1x16xf32>
    %124 = arith.mulf %123, %1 : vector<1x16xf32>
    %c0_65 = arith.constant 0 : index
    %c0_66 = arith.constant 0 : index
    %c0_67 = arith.constant 0 : index
    %125 = vector.load %arg13[%c0_65, %c0_66, %c0_67] : memref<1x1x16xf32, #tpu.memory_space<vmem>>, vector<1x1x16xf32>
    %126 = vector.shape_cast %125 : vector<1x1x16xf32> to vector<1x16xf32>
    %127 = vector.shape_cast %124 : vector<1x16xf32> to vector<1x1x16xf32>
    tpu.vector_store %arg13[%c0_65, %c0_66, %c0_67], %127 {strides = array<i32>} : memref<1x1x16xf32, #tpu.memory_space<vmem>>, vector<1x1x16xf32>,
    return
  }
  func.func @transform_0(%arg0: i32) -> (i32, i32, i32) {
    %c0_i32 = arith.constant 0 : i32
    %c0_i32_0 = arith.constant 0 : i32
    %c0_i32_1 = arith.constant 0 : i32
    return %arg0, %c0_i32, %c0_i32_0 : i32, i32, i32
  }
  func.func @transform_1(%arg0: i32) -> (i32, i32, i32) {
    %c0_i32 = arith.constant 0 : i32
    %c0_i32_0 = arith.constant 0 : i32
    %c0_i32_1 = arith.constant 0 : i32
    return %arg0, %c0_i32, %c0_i32_0 : i32, i32, i32
  }
  func.func @transform_2(%arg0: i32) -> (i32, i32, i32) {
    %c0_i32 = arith.constant 0 : i32
    %c0_i32_0 = arith.constant 0 : i32
    %c0_i32_1 = arith.constant 0 : i32
    %c0_i32_2 = arith.constant 0 : i32
    return %c0_i32, %c0_i32_0, %c0_i32_1 : i32, i32, i32
  }
  func.func @transform_3(%arg0: i32) -> (i32, i32) {
    %c0_i32 = arith.constant 0 : i32
    %c0_i32_0 = arith.constant 0 : i32
    %c0_i32_1 = arith.constant 0 : i32
    return %c0_i32, %c0_i32_0 : i32, i32
  }
  func.func @transform_4(%arg0: i32) -> (i32, i32) {
    %c0_i32 = arith.constant 0 : i32
    %c0_i32_0 = arith.constant 0 : i32
    %c0_i32_1 = arith.constant 0 : i32
    return %c0_i32, %c0_i32_0 : i32, i32
  }
  func.func @transform_5(%arg0: i32) -> (i32, i32) {
    %c0_i32 = arith.constant 0 : i32
    %c0_i32_0 = arith.constant 0 : i32
    %c0_i32_1 = arith.constant 0 : i32
    return %c0_i32, %c0_i32_0 : i32, i32
  }
  func.func @transform_6(%arg0: i32) -> (i32, i32, i32) {
    %c0_i32 = arith.constant 0 : i32
    %c0_i32_0 = arith.constant 0 : i32
    %c0_i32_1 = arith.constant 0 : i32
    %c0_i32_2 = arith.constant 0 : i32
    return %c0_i32, %c0_i32_0, %c0_i32_1 : i32, i32, i32
  }
  func.func @transform_7(%arg0: i32) -> (i32, i32) {
    %c0_i32 = arith.constant 0 : i32
    %c0_i32_0 = arith.constant 0 : i32
    %c0_i32_1 = arith.constant 0 : i32
    return %c0_i32, %c0_i32_0 : i32, i32
  }
  func.func @transform_8(%arg0: i32) -> (i32, i32) {
    %c0_i32 = arith.constant 0 : i32
    %c0_i32_0 = arith.constant 0 : i32
    %c0_i32_1 = arith.constant 0 : i32
    return %c0_i32, %c0_i32_0 : i32, i32
  }
  func.func @transform_9(%arg0: i32) -> (i32, i32) {
    %c0_i32 = arith.constant 0 : i32
    %c0_i32_0 = arith.constant 0 : i32
    %c0_i32_1 = arith.constant 0 : i32
    return %c0_i32, %c0_i32_0 : i32, i32
  }
  func.func @transform_10(%arg0: i32) -> (i32, i32) {
    %c0_i32 = arith.constant 0 : i32
    %c0_i32_0 = arith.constant 0 : i32
    %c0_i32_1 = arith.constant 0 : i32
    return %c0_i32, %c0_i32_0 : i32, i32
  }
  func.func @transform_11(%arg0: i32) -> (i32, i32) {
    %c0_i32 = arith.constant 0 : i32
    %c0_i32_0 = arith.constant 0 : i32
    %c0_i32_1 = arith.constant 0 : i32
    return %c0_i32, %c0_i32_0 : i32, i32
  }
  func.func @transform_12(%arg0: i32) -> (i32, i32, i32) {
    %c0_i32 = arith.constant 0 : i32
    %c0_i32_0 = arith.constant 0 : i32
    %c0_i32_1 = arith.constant 0 : i32
    return %arg0, %c0_i32, %c0_i32_0 : i32, i32, i32
  }
}

</mosaic_0001>

<llo_original>
// kernel: tpu_custom_call.1
$region0: #{tpu_custom_call.1}
  #allocation0 [shape = 'u32[]', space=smem, size = 0x4, offset = 0x4, fixed_abs, tag = 'smem constant byte address 0x4 - core index']
  #allocation1 [shape = 'u32[144,128]{1,0:T(1,128)}', space=vmem, size = 0x12000, scoped, tag = 'internal scratch']
  #allocation2 [shape = 'f32[1,1]{1,0:T(1,128)S(1)}', space=vmem, size = 0x200, scoped, tag = 'scoped memory for tpu_custom_call.1']
  %s0 = inlined_call_operand.vmem [shape: f32[2,4,16], index: 0, kind: input, shape index: {}]
  %s1 = inlined_call_operand.vmem [shape: f32[2,1,16], index: 1, kind: input, shape index: {}]
  %s2 = inlined_call_operand.vmem [shape: f32[3,32,4], index: 2, kind: input, shape index: {}]
  %s3 = inlined_call_operand.vmem [shape: f32[32,1], index: 3, kind: input, shape index: {}]
  %s4 = inlined_call_operand.vmem [shape: f32[32,1], index: 4, kind: input, shape index: {}]
  %s5 = inlined_call_operand.vmem [shape: f32[32,1], index: 5, kind: input, shape index: {}]
  %s6 = inlined_call_operand.vmem [shape: f32[3,32,32], index: 6, kind: input, shape index: {}]
  %s7 = inlined_call_operand.vmem [shape: f32[32,1], index: 7, kind: input, shape index: {}]
  %s8 = inlined_call_operand.vmem [shape: f32[32,1], index: 8, kind: input, shape index: {}]
  %s9 = inlined_call_operand.vmem [shape: f32[32,1], index: 9, kind: input, shape index: {}]
  %s10 = inlined_call_operand.vmem [shape: f32[1,32], index: 10, kind: input, shape index: {}]
  %s11 = inlined_call_operand.<no memory space> [shape: f32[1,1], index: 11, kind: input, shape index: {}]
  %s12 = inlined_call_operand.hbm [shape: f32[2,1,16], index: 12, kind: output, shape index: {}]
  %s13 = sld [smem:[#allocation0]]
  $region81: #{tpu_custom_call.1} parent=0
    _
  %s15 = ssub.s32 1, %s13
  %s16 = scalar_select 0, %s15, %s13
  %v17 = vstv %s11
  %18 = vst [vmem:[#allocation2] sm:$0x1] %v17
  $region1: #{tpu_custom_call.1} parent=0
    #allocation3 [shape = 'u8[1024]{0}', space=vmem, size = 0x400, scoped, tag = 'output window, operand 0']
    #allocation4 [shape = 's32[2]{0}', space=sflag, size = 0x8, scoped, tag = 'scoped memory for tpu_custom_call.1']
    %19 = vsyncpa [#allocation4], 0
    %s20 = scalar_lea.sflag [#allocation4], 1
    %21 = vsyncpa %s20, 0
    loop: start=0, step=1, limit=4
    $region2: #{tpu_custom_call.1} parent=1 // loop_pre_header
      _
    $region3: #{tpu_custom_call.1} parent=1 // loop_header
      %s23 = sphi 0, %s27
      %p24 = scmp.ge.s32.totalorder %s23, 4
      %s33 = sphi 0, %s35
      %s36 = sphi 0, %s33
      %s37 = sphi 0, %s36
      %s53 = sphi 0, %s37
      %s59 = sphi 0, %s61
      %s62 = sphi 0, %s59
      %s63 = sphi 0, %s62
      %s79 = sphi 0, %s63
      %s83 = sphi 0, %s83
      %s85 = sphi 0, %s83
      %s86 = sphi 0, %s85
      %s100 = sphi 0, %s86
      %s104 = sphi 0, %s104
      %s106 = sphi 0, %s104
      %s107 = sphi 0, %s106
      %s121 = sphi 0, %s107
      %s125 = sphi 0, %s125
      %s127 = sphi 0, %s125
      %s128 = sphi 0, %s127
      %s142 = sphi 0, %s128
      %s146 = sphi 0, %s146
      %s148 = sphi 0, %s146
      %s149 = sphi 0, %s148
      %s163 = sphi 0, %s149
      %s167 = sphi 0, %s167
      %s169 = sphi 0, %s167
      %s170 = sphi 0, %s169
      %s184 = sphi 0, %s170
      %s188 = sphi 0, %s188
      %s190 = sphi 0, %s188
      %s191 = sphi 0, %s190
      %s205 = sphi 0, %s191
      %s209 = sphi 0, %s209
      %s211 = sphi 0, %s209
      %s212 = sphi 0, %s211
      %s226 = sphi 0, %s212
      %s230 = sphi 0, %s230
      %s232 = sphi 0, %s230
      %s233 = sphi 0, %s232
      %s247 = sphi 0, %s233
      %s251 = sphi 0, %s251
      %s253 = sphi 0, %s251
      %s254 = sphi 0, %s253
      %s268 = sphi 0, %s254
      %s272 = sphi 0, %s272
      %s274 = sphi 0, %s272
      %s275 = sphi 0, %s274
      %s289 = sphi 0, %s275
      %s295 = sphi 0, %s297
      %s298 = sphi 0, %s295
      %s299 = sphi 0, %s298
      %s315 = sphi 0, %s299
    $region4: #{tpu_custom_call.1} parent=1 // loop_header_branch
      %26 = sbr.rel (%p24) target = $region8
    $region5: #{tpu_custom_call.1} parent=1 // loop_body
      %s28 = ssub.s32 %s23, 1
      %s29 = ssub.s32 %s23, 2
      %s30 = sadd.s32 %s23, 1
      %s31 = ssub.s32 %s23, %s30
      %p32 = scmp.eq.s32.totalorder %s31, 0
      %s34 = sadd.s32 %s33, 1
      %s35 = scalar_select %p32, %s33, %s34
      %p38 = pneg %p32
      %p39 = scmp.eq.s32.totalorder %s23, 1
      %p40 = por %p38, %p39
      %p41 = scmp.ne.s32.totalorder %s33, %s36
      %p42 = scmp.eq.s32.totalorder %s23, 0
      %p43 = por %p41, %p42
      %p44 = scmp.ne.s32.totalorder %s33, %s36
      %p45 = scmp.eq.s32.totalorder %s28, 1
      %p46 = por %p44, %p45
      %p47 = scmp.ne.s32.totalorder %s36, %s37
      %p48 = scmp.eq.s32.totalorder %s28, 0
      %p49 = por %p47, %p48
      %p50 = scmp.ne.s32.totalorder %s36, %s37
      %p51 = scmp.eq.s32.totalorder %s29, 1
      %p52 = por %p50, %p51
      %p54 = scmp.ne.s32.totalorder %s37, %s53
      %p55 = scmp.eq.s32.totalorder %s29, 0
      %p56 = por %p54, %p55
      %s57 = ssub.s32 %s23, %s30
      %p58 = scmp.eq.s32.totalorder %s57, 0
      %s60 = sadd.s32 %s59, 1
      %s61 = scalar_select %p58, %s59, %s60
      %p64 = pneg %p58
      %p65 = scmp.eq.s32.totalorder %s23, 1
      %p66 = por %p64, %p65
      %p67 = scmp.ne.s32.totalorder %s59, %s62
      %p68 = scmp.eq.s32.totalorder %s23, 0
      %p69 = por %p67, %p68
      %p70 = scmp.ne.s32.totalorder %s59, %s62
      %p71 = scmp.eq.s32.totalorder %s28, 1
      %p72 = por %p70, %p71
      %p73 = scmp.ne.s32.totalorder %s62, %s63
      %p74 = scmp.eq.s32.totalorder %s28, 0
      %p75 = por %p73, %p74
      %p76 = scmp.ne.s32.totalorder %s62, %s63
      %p77 = scmp.eq.s32.totalorder %s29, 1
      %p78 = por %p76, %p77
      %p80 = scmp.ne.s32.totalorder %s63, %s79
      %p81 = scmp.eq.s32.totalorder %s29, 0
      %p82 = por %p80, %p81
      %s84 = sadd.s32 %s83, 1
      %p87 = scmp.eq.s32.totalorder %s23, 1
      %p88 = scmp.ne.s32.totalorder %s83, %s85
      %p89 = scmp.eq.s32.totalorder %s23, 0
      %p90 = por %p88, %p89
      %p91 = scmp.ne.s32.totalorder %s83, %s85
      %p92 = scmp.eq.s32.totalorder %s28, 1
      %p93 = por %p91, %p92
      %p94 = scmp.ne.s32.totalorder %s85, %s86
      %p95 = scmp.eq.s32.totalorder %s28, 0
      %p96 = por %p94, %p95
      %p97 = scmp.ne.s32.totalorder %s85, %s86
      %p98 = scmp.eq.s32.totalorder %s29, 1
      %p99 = por %p97, %p98
      %p101 = scmp.ne.s32.totalorder %s86, %s100
      %p102 = scmp.eq.s32.totalorder %s29, 0
      %p103 = por %p101, %p102
      %s105 = sadd.s32 %s104, 1
      %p108 = scmp.eq.s32.totalorder %s23, 1
      %p109 = scmp.ne.s32.totalorder %s104, %s106
      %p110 = scmp.eq.s32.totalorder %s23, 0
      %p111 = por %p109, %p110
      %p112 = scmp.ne.s32.totalorder %s104, %s106
      %p113 = scmp.eq.s32.totalorder %s28, 1
      %p114 = por %p112, %p113
      %p115 = scmp.ne.s32.totalorder %s106, %s107
      %p116 = scmp.eq.s32.totalorder %s28, 0
      %p117 = por %p115, %p116
      %p118 = scmp.ne.s32.totalorder %s106, %s107
      %p119 = scmp.eq.s32.totalorder %s29, 1
      %p120 = por %p118, %p119
      %p122 = scmp.ne.s32.totalorder %s107, %s121
      %p123 = scmp.eq.s32.totalorder %s29, 0
      %p124 = por %p122, %p123
      %s126 = sadd.s32 %s125, 1
      %p129 = scmp.eq.s32.totalorder %s23, 1
      %p130 = scmp.ne.s32.totalorder %s125, %s127
      %p131 = scmp.eq.s32.totalorder %s23, 0
      %p132 = por %p130, %p131
      %p133 = scmp.ne.s32.totalorder %s125, %s127
      %p134 = scmp.eq.s32.totalorder %s28, 1
      %p135 = por %p133, %p134
      %p136 = scmp.ne.s32.totalorder %s127, %s128
      %p137 = scmp.eq.s32.totalorder %s28, 0
      %p138 = por %p136, %p137
      %p139 = scmp.ne.s32.totalorder %s127, %s128
      %p140 = scmp.eq.s32.totalorder %s29, 1
      %p141 = por %p139, %p140
      %p143 = scmp.ne.s32.totalorder %s128, %s142
      %p144 = scmp.eq.s32.totalorder %s29, 0
      %p145 = por %p143, %p144
      %s147 = sadd.s32 %s146, 1
      %p150 = scmp.eq.s32.totalorder %s23, 1
      %p151 = scmp.ne.s32.totalorder %s146, %s148
      %p152 = scmp.eq.s32.totalorder %s23, 0
      %p153 = por %p151, %p152
      %p154 = scmp.ne.s32.totalorder %s146, %s148
      %p155 = scmp.eq.s32.totalorder %s28, 1
      %p156 = por %p154, %p155
      %p157 = scmp.ne.s32.totalorder %s148, %s149
      %p158 = scmp.eq.s32.totalorder %s28, 0
      %p159 = por %p157, %p158
      %p160 = scmp.ne.s32.totalorder %s148, %s149
      %p161 = scmp.eq.s32.totalorder %s29, 1
      %p162 = por %p160, %p161
      %p164 = scmp.ne.s32.totalorder %s149, %s163
      %p165 = scmp.eq.s32.totalorder %s29, 0
      %p166 = por %p164, %p165
      %s168 = sadd.s32 %s167, 1
      %p171 = scmp.eq.s32.totalorder %s23, 1
      %p172 = scmp.ne.s32.totalorder %s167, %s169
      %p173 = scmp.eq.s32.totalorder %s23, 0
      %p174 = por %p172, %p173
      %p175 = scmp.ne.s32.totalorder %s167, %s169
      %p176 = scmp.eq.s32.totalorder %s28, 1
      %p177 = por %p175, %p176
      %p178 = scmp.ne.s32.totalorder %s169, %s170
      %p179 = scmp.eq.s32.totalorder %s28, 0
      %p180 = por %p178, %p179
      %p181 = scmp.ne.s32.totalorder %s169, %s170
      %p182 = scmp.eq.s32.totalorder %s29, 1
      %p183 = por %p181, %p182
      %p185 = scmp.ne.s32.totalorder %s170, %s184
      %p186 = scmp.eq.s32.totalorder %s29, 0
      %p187 = por %p185, %p186
      %s189 = sadd.s32 %s188, 1
      %p192 = scmp.eq.s32.totalorder %s23, 1
      %p193 = scmp.ne.s32.totalorder %s188, %s190
      %p194 = scmp.eq.s32.totalorder %s23, 0
      %p195 = por %p193, %p194
      %p196 = scmp.ne.s32.totalorder %s188, %s190
      %p197 = scmp.eq.s32.totalorder %s28, 1
      %p198 = por %p196, %p197
      %p199 = scmp.ne.s32.totalorder %s190, %s191
      %p200 = scmp.eq.s32.totalorder %s28, 0
      %p201 = por %p199, %p200
      %p202 = scmp.ne.s32.totalorder %s190, %s191
      %p203 = scmp.eq.s32.totalorder %s29, 1
      %p204 = por %p202, %p203
      %p206 = scmp.ne.s32.totalorder %s191, %s205
      %p207 = scmp.eq.s32.totalorder %s29, 0
      %p208 = por %p206, %p207
      %s210 = sadd.s32 %s209, 1
      %p213 = scmp.eq.s32.totalorder %s23, 1
      %p214 = scmp.ne.s32.totalorder %s209, %s211
      %p215 = scmp.eq.s32.totalorder %s23, 0
      %p216 = por %p214, %p215
      %p217 = scmp.ne.s32.totalorder %s209, %s211
      %p218 = scmp.eq.s32.totalorder %s28, 1
      %p219 = por %p217, %p218
      %p220 = scmp.ne.s32.totalorder %s211, %s212
      %p221 = scmp.eq.s32.totalorder %s28, 0
      %p222 = por %p220, %p221
      %p223 = scmp.ne.s32.totalorder %s211, %s212
      %p224 = scmp.eq.s32.totalorder %s29, 1
      %p225 = por %p223, %p224
      %p227 = scmp.ne.s32.totalorder %s212, %s226
      %p228 = scmp.eq.s32.totalorder %s29, 0
      %p229 = por %p227, %p228
      %s231 = sadd.s32 %s230, 1
      %p234 = scmp.eq.s32.totalorder %s23, 1
      %p235 = scmp.ne.s32.totalorder %s230, %s232
      %p236 = scmp.eq.s32.totalorder %s23, 0
      %p237 = por %p235, %p236
      %p238 = scmp.ne.s32.totalorder %s230, %s232
      %p239 = scmp.eq.s32.totalorder %s28, 1
      %p240 = por %p238, %p239
      %p241 = scmp.ne.s32.totalorder %s232, %s233
      %p242 = scmp.eq.s32.totalorder %s28, 0
      %p243 = por %p241, %p242
      %p244 = scmp.ne.s32.totalorder %s232, %s233
      %p245 = scmp.eq.s32.totalorder %s29, 1
      %p246 = por %p244, %p245
      %p248 = scmp.ne.s32.totalorder %s233, %s247
      %p249 = scmp.eq.s32.totalorder %s29, 0
      %p250 = por %p248, %p249
      %s252 = sadd.s32 %s251, 1
      %p255 = scmp.eq.s32.totalorder %s23, 1
      %p256 = scmp.ne.s32.totalorder %s251, %s253
      %p257 = scmp.eq.s32.totalorder %s23, 0
      %p258 = por %p256, %p257
      %p259 = scmp.ne.s32.totalorder %s251, %s253
      %p260 = scmp.eq.s32.totalorder %s28, 1
      %p261 = por %p259, %p260
      %p262 = scmp.ne.s32.totalorder %s253, %s254
      %p263 = scmp.eq.s32.totalorder %s28, 0
      %p264 = por %p262, %p263
      %p265 = scmp.ne.s32.totalorder %s253, %s254
      %p266 = scmp.eq.s32.totalorder %s29, 1
      %p267 = por %p265, %p266
      %p269 = scmp.ne.s32.totalorder %s254, %s268
      %p270 = scmp.eq.s32.totalorder %s29, 0
      %p271 = por %p269, %p270
      %s273 = sadd.s32 %s272, 1
      %p276 = scmp.eq.s32.totalorder %s23, 1
      %p277 = scmp.ne.s32.totalorder %s272, %s274
      %p278 = scmp.eq.s32.totalorder %s23, 0
      %p279 = por %p277, %p278
      %p280 = scmp.ne.s32.totalorder %s272, %s274
      %p281 = scmp.eq.s32.totalorder %s28, 1
      %p282 = por %p280, %p281
      %p283 = scmp.ne.s32.totalorder %s274, %s275
      %p284 = scmp.eq.s32.totalorder %s28, 0
      %p285 = por %p283, %p284
      %p286 = scmp.ne.s32.totalorder %s274, %s275
      %p287 = scmp.eq.s32.totalorder %s29, 1
      %p288 = por %p286, %p287
      %p290 = scmp.ne.s32.totalorder %s275, %s289
      %p291 = scmp.eq.s32.totalorder %s29, 0
      %p292 = por %p290, %p291
      %s293 = ssub.s32 %s23, %s30
      %p294 = scmp.eq.s32.totalorder %s293, 0
      %s296 = sadd.s32 %s295, 1
      %s297 = scalar_select %p294, %s295, %s296
      %p300 = pneg %p294
      %p301 = scmp.eq.s32.totalorder %s23, 1
      %p302 = por %p300, %p301
      %p303 = scmp.ne.s32.totalorder %s295, %s298
      %p304 = scmp.eq.s32.totalorder %s23, 0
      %p305 = por %p303, %p304
      %p306 = scmp.ne.s32.totalorder %s295, %s298
      %p307 = scmp.eq.s32.totalorder %s28, 1
      %p308 = por %p306, %p307
      %p309 = scmp.ne.s32.totalorder %s298, %s299
      %p310 = scmp.eq.s32.totalorder %s28, 0
      %p311 = por %p309, %p310
      %p312 = scmp.ne.s32.totalorder %s298, %s299
      %p313 = scmp.eq.s32.totalorder %s29, 1
      %p314 = por %p312, %p313
      %p316 = scmp.ne.s32.totalorder %s299, %s315
      %p317 = scmp.eq.s32.totalorder %s29, 0
      %p318 = por %p316, %p317
      %p319 = scmp.le.s32.totalorder 1, %s23
      %p320 = scmp.lt.s32.totalorder %s23, 3
      %p321 = pnand %p319, %p320
      %p322 = pneg %p321
      // Predicated region
      $region9: #{tpu_custom_call.1} parent=5 // pred_check
        _
      $region10: #{tpu_custom_call.1} parent=5 // pred_check_branch
        %324 = sbr.rel (%p321) target = $region12
      $region11: #{tpu_custom_call.1} parent=5 // pred_region
        %s325 = ssub.s32 %s23, 1
        // Predicated region
        $region13: #{tpu_custom_call.1} parent=11 // pred_check
          %p326 = pneg %p96
        $region14: #{tpu_custom_call.1} parent=11 // pred_check_branch
          %328 = sbr.rel (%p326) target = $region16
        $region15: #{tpu_custom_call.1} parent=11 // pred_region
          _
        $region16: #{tpu_custom_call.1} parent=11 // pred_fallthru
          _
        // Predicated region
        $region17: #{tpu_custom_call.1} parent=11 // pred_check
          %p329 = pneg %p117
        $region18: #{tpu_custom_call.1} parent=11 // pred_check_branch
          %331 = sbr.rel (%p329) target = $region20
        $region19: #{tpu_custom_call.1} parent=11 // pred_region
          _
        $region20: #{tpu_custom_call.1} parent=11 // pred_fallthru
          _
        // Predicated region
        $region21: #{tpu_custom_call.1} parent=11 // pred_check
          %p332 = pneg %p138
        $region22: #{tpu_custom_call.1} parent=11 // pred_check_branch
          %334 = sbr.rel (%p332) target = $region24
        $region23: #{tpu_custom_call.1} parent=11 // pred_region
          _
        $region24: #{tpu_custom_call.1} parent=11 // pred_fallthru
          _
        // Predicated region
        $region25: #{tpu_custom_call.1} parent=11 // pred_check
          %p335 = pneg %p159
        $region26: #{tpu_custom_call.1} parent=11 // pred_check_branch
          %337 = sbr.rel (%p335) target = $region28
        $region27: #{tpu_custom_call.1} parent=11 // pred_region
          _
        $region28: #{tpu_custom_call.1} parent=11 // pred_fallthru
          _
        // Predicated region
        $region29: #{tpu_custom_call.1} parent=11 // pred_check
          %p338 = pneg %p180
        $region30: #{tpu_custom_call.1} parent=11 // pred_check_branch
          %340 = sbr.rel (%p338) target = $region32
        $region31: #{tpu_custom_call.1} parent=11 // pred_region
          _
        $region32: #{tpu_custom_call.1} parent=11 // pred_fallthru
          _
        // Predicated region
        $region33: #{tpu_custom_call.1} parent=11 // pred_check
          %p341 = pneg %p201
        $region34: #{tpu_custom_call.1} parent=11 // pred_check_branch
          %343 = sbr.rel (%p341) target = $region36
        $region35: #{tpu_custom_call.1} parent=11 // pred_region
          _
        $region36: #{tpu_custom_call.1} parent=11 // pred_fallthru
          _
        // Predicated region
        $region37: #{tpu_custom_call.1} parent=11 // pred_check
          %p344 = pneg %p222
        $region38: #{tpu_custom_call.1} parent=11 // pred_check_branch
          %346 = sbr.rel (%p344) target = $region40
        $region39: #{tpu_custom_call.1} parent=11 // pred_region
          _
        $region40: #{tpu_custom_call.1} parent=11 // pred_fallthru
          _
        // Predicated region
        $region41: #{tpu_custom_call.1} parent=11 // pred_check
          %p347 = pneg %p243
        $region42: #{tpu_custom_call.1} parent=11 // pred_check_branch
          %349 = sbr.rel (%p347) target = $region44
        $region43: #{tpu_custom_call.1} parent=11 // pred_region
          _
        $region44: #{tpu_custom_call.1} parent=11 // pred_fallthru
          _
        // Predicated region
        $region45: #{tpu_custom_call.1} parent=11 // pred_check
          %p350 = pneg %p264
        $region46: #{tpu_custom_call.1} parent=11 // pred_check_branch
          %352 = sbr.rel (%p350) target = $region48
        $region47: #{tpu_custom_call.1} parent=11 // pred_region
          _
        $region48: #{tpu_custom_call.1} parent=11 // pred_fallthru
          _
        // Predicated region
        $region49: #{tpu_custom_call.1} parent=11 // pred_check
          %p353 = pneg %p285
        $region50: #{tpu_custom_call.1} parent=11 // pred_check_branch
          %355 = sbr.rel (%p353) target = $region52
        $region51: #{tpu_custom_call.1} parent=11 // pred_region
          _
        $region52: #{tpu_custom_call.1} parent=11 // pred_fallthru
          _
      $region12: #{tpu_custom_call.1} parent=5 // pred_fallthru
        _
      %p356 = scmp.lt.s32.totalorder %s23, 2
      // Predicated region
      $region53: #{tpu_custom_call.1} parent=5 // pred_check
        %p357 = pneg %p356
      $region54: #{tpu_custom_call.1} parent=5 // pred_check_branch
        %359 = sbr.rel (%p357) target = $region56
      $region55: #{tpu_custom_call.1} parent=5 // pred_region
        // Predicated region
        $region57: #{tpu_custom_call.1} parent=55 // pred_check
          %p360 = pneg %p43
        $region58: #{tpu_custom_call.1} parent=55 // pred_check_branch
          %362 = sbr.rel (%p360) target = $region60
        $region59: #{tpu_custom_call.1} parent=55 // pred_region
          %p363 = scmp.lt.s32.totalorder %s23, 1
          %s364 = scalar_select %p363, %s23, 1
          %s365 = smul.addr %s364, 4
          %s366 = scalar_lea.vmem %s0, %s365
        $region60: #{tpu_custom_call.1} parent=55 // pred_fallthru
          _
        // Predicated region
        $region61: #{tpu_custom_call.1} parent=55 // pred_check
          %p367 = pneg %p69
        $region62: #{tpu_custom_call.1} parent=55 // pred_check_branch
          %369 = sbr.rel (%p367) target = $region64
        $region63: #{tpu_custom_call.1} parent=55 // pred_region
          %p370 = scmp.lt.s32.totalorder %s23, 1
          %s371 = scalar_select %p370, %s23, 1
          %s372 = scalar_lea.vmem %s1, %s371
        $region64: #{tpu_custom_call.1} parent=55 // pred_fallthru
          _
      $region56: #{tpu_custom_call.1} parent=5 // pred_fallthru
        _
      %p373 = scmp.le.s32.totalorder 1, %s23
      %p374 = scmp.lt.s32.totalorder %s23, 3
      %p375 = pnand %p373, %p374
      %p376 = pneg %p375
      // Predicated region
      $region65: #{tpu_custom_call.1} parent=5 // pred_check
        _
      $region66: #{tpu_custom_call.1} parent=5 // pred_check_branch
        %378 = sbr.rel (%p375) target = $region68
      $region67: #{tpu_custom_call.1} parent=5 // pred_region
        %s379 = ssub.s32 %s23, 1
        %p380 = scmp.lt.s32.totalorder %s28, 1
        %s381 = scalar_select %p380, %s28, 1
        %s382 = smul.addr %s381, 4
        %s383 = scalar_lea.vmem %s0, %s382
        %p384 = pneg %p49
        %p385 = pneg %p46
        %p386 = scmp.lt.s32.totalorder %s28, 1
        %s387 = scalar_select %p386, %s28, 1
        %s388 = scalar_lea.vmem %s1, %s387
        %p389 = pneg %p75
        %p390 = pneg %p72
        %p391 = pneg %p96
        %p392 = pneg %p93
        %p393 = pneg %p117
        %p394 = pneg %p114
        %p395 = pneg %p138
        %p396 = pneg %p135
        %p397 = pneg %p159
        %p398 = pneg %p156
        %p399 = pneg %p180
        %p400 = pneg %p177
        %p401 = pneg %p201
        %p402 = pneg %p198
        %p403 = pneg %p222
        %p404 = pneg %p219
        %p405 = pneg %p243
        %p406 = pneg %p240
        %p407 = pneg %p264
        %p408 = pneg %p261
        %p409 = pneg %p285
        %p410 = pneg %p282
        %p411 = pneg %p311
        %p412 = pneg %p308
        %s413 = sand.u32 %s298, 1
        %s414 = scalar_lea.sflag [#allocation4], %s413
        %s415 = sand.u32 %s298, 1
        %s416 = scalar_lea.vmem [#allocation3], %s415
        %p417 = scmp.lt.s32.totalorder %s28, 1
        %s418 = scalar_select %p417, %s28, 1
        %s419 = smul.addr %s418, 4
        %s420 = scalar_lea.vmem %s0, %s419
        %p421 = scmp.lt.s32.totalorder %s28, 1
        %s422 = scalar_select %p421, %s28, 1
        %s423 = scalar_lea.vmem %s1, %s422
        %v424 = vld [vmem:[%s423] sm:$0x1]
        %v425 = vlaneseq
        %v426 = vand.u32 %v425, 127
        %v427 = vld [vmem:[%s420] sm:$0xf]
        %v429 = vlaneseq
        %v430 = vshrl.u32 %v429, 7
        %v431 = vsub.s32 0, %v430
        %v432 = vrot.slane %v424, %v431
        %v434 = vmul.f32 %v427, %v432
        %vm435 = vcmask 1047680
        %436 = vrot.lane.b32.xlu0 %v434, 16
        %v437 = vpop.permute.xlu0 %436
        %v438 = vsel %vm435, %v437, %v434
        %439 = vrot.lane.b32.xlu0 %v438, 16
        %v440 = vpop.permute.xlu0 %439
        %v441 = vsel %vm435, %v440, %v434
        %vm442 = vcmp.ge.s32.totalorder %v426, 1
        %v443 = vsel %vm442, 1, 0
        %vm444 = vcmp.eq.s32.totalorder %v443, 1
        %446 = vrot.lane.b32.xlu0 %v441, 113
        %v447 = vpop.permute.xlu0 %446
        %v449 = vsel %vm444, %v447, 0.0
        %v450 = vld [vmem:[%s2] sm:$0xff]
        %v451 = vld [vmem:[%s2 + $0x8] sm:$0xff]
        %v452 = vld [vmem:[%s2 + $0x10] sm:$0xff]
        %v453 = vld [vmem:[%s2 + $0x18] sm:$0xff]
        %s454 = scalar_lea.vmem %s2, 32
        %v455 = vld [vmem:[%s454] sm:$0xff]
        %v456 = vld [vmem:[%s454 + $0x8] sm:$0xff]
        %v457 = vld [vmem:[%s454 + $0x10] sm:$0xff]
        %v458 = vld [vmem:[%s454 + $0x18] sm:$0xff]
        %vm459 = vcmask 31744
        %v461 = vsel %vm459, %v455, 0
        %v464 = vsel %vm459, %v456, 0
        %v467 = vsel %vm459, %v457, 0
        %v470 = vsel %vm459, %v458, 0
        %vm472 = vcmask 1043456
        %v474 = vsel %vm472, %v434, 0
        %476 = vmatprep.subr.mxu0 0.0
        %477 = vmatpush1.msra.mxu0 %v474
        %478 = vmatprep.subr.mxu0 0.0
        %479 = vmatpush1.msra.mxu0 0.0
        %480 = vmatprep.subr.mxu0 0.0
        %481 = vmatpush1.msra.mxu0 0.0
        %482 = vmatprep.subr.mxu0 0.0
        %483 = vmatpush1.msra.mxu0 0.0
        %484 = vmatprep.subr.mxu0 0.0
        %485 = vmatpush1.msra.mxu0 0.0
        %486 = vmatprep.subr.mxu0 0.0
        %487 = vmatpush1.msra.mxu0 0.0
        %488 = vmatprep.subr.mxu0 0.0
        %489 = vmatpush1.msra.mxu0 0.0
        %490 = vmatprep.subr.mxu0 0.0
        %491 = vmatpush1.msra.mxu0 0.0
        %492 = vmatprep.subr.mxu0 0.0
        %493 = vmatpush1.msra.mxu0 0.0
        %494 = vmatprep.subr.mxu0 0.0
        %495 = vmatpush1.msra.mxu0 0.0
        %496 = vmatprep.subr.mxu0 0.0
        %497 = vmatpush1.msra.mxu0 0.0
        %498 = vmatprep.subr.mxu0 0.0
        %499 = vmatpush1.msra.mxu0 0.0
        %500 = vmatprep.subr.mxu0 0.0
        %501 = vmatpush1.msra.mxu0 0.0
        %502 = vmatprep.subr.mxu0 0.0
        %503 = vmatpush1.msra.mxu0 0.0
        %504 = vmatprep.subr.mxu0 0.0
        %505 = vmatpush1.msra.mxu0 0.0
        %506 = vmatprep.subr.mxu0 0.0
        %507 = vmatpush1.msra.mxu0 0.0
        %508 = vmatprep.subr.mxu0 0.0
        %509 = vmatpush1.msra.mxu0 0.0
        %510 = vmatprep.subr.mxu0 0.0
        %511 = vmatpush1.msra.mxu0 0.0
        %512 = vmatprep.subr.mxu0 0.0
        %513 = vmatpush1.msra.mxu0 0.0
        %514 = vmatprep.subr.mxu0 0.0
        %515 = vmatpush1.msra.mxu0 0.0
        %516 = vmatprep.subr.mxu0 0.0
        %517 = vmatpush1.msra.mxu0 0.0
        %518 = vmatprep.subr.mxu0 0.0
        %519 = vmatpush1.msra.mxu0 0.0
        %520 = vmatprep.subr.mxu0 0.0
        %521 = vmatpush1.msra.mxu0 0.0
        %522 = vmatprep.subr.mxu0 0.0
        %523 = vmatpush1.msra.mxu0 0.0
        %524 = vmatprep.subr.mxu0 0.0
        %525 = vmatpush1.msra.mxu0 0.0
        %526 = vmatprep.subr.mxu0 0.0
        %527 = vmatpush1.msra.mxu0 0.0
        %528 = vmatprep.subr.mxu0 0.0
        %529 = vmatpush1.msra.mxu0 0.0
        %530 = vmatprep.subr.mxu0 0.0
        %531 = vmatpush1.msra.mxu0 0.0
        %532 = vmatprep.subr.mxu0 0.0
        %533 = vmatpush1.msra.mxu0 0.0
        %534 = vmatprep.subr.mxu0 0.0
        %535 = vmatpush1.msra.mxu0 0.0
        %536 = vmatprep.subr.mxu0 0.0
        %537 = vmatpush1.msra.mxu0 0.0
        %538 = vmatprep.subr.mxu0 0.0
        %539 = vmatpush1.msra.mxu0 0.0
        %540 = vmatprep.mubr.f32.mxu0 0.0
        %541 = vmatmul.mubr.f32.gmra.mrb[0].mxu0 %v461
        %v542 = vpop.f32.mrb[0].mxu0
        %v543 = vadd.f32 0.0, %v542
        %v544 = vpop.f32.mrb[0].mxu0
        %545 = vmatprep.mubr.f32.mxu0 0.0
        %546 = vmatmul.mubr.f32.gmra.mrb[0].mxu0 %v464
        %v547 = vpop.f32.mrb[0].mxu0
        %v548 = vadd.f32 0.0, %v547
        %v549 = vpop.f32.mrb[0].mxu0
        %550 = vmatprep.mubr.f32.mxu0 0.0
        %551 = vmatmul.mubr.f32.gmra.mrb[0].mxu0 %v467
        %v552 = vpop.f32.mrb[0].mxu0
        %v553 = vadd.f32 0.0, %v552
        %v554 = vpop.f32.mrb[0].mxu0
        %555 = vmatprep.mubr.f32.mxu0 0.0
        %556 = vmatmul.mubr.f32.gmra.mrb[0].mxu0 %v470
        %v557 = vpop.f32.mrb[0].mxu0
        %v558 = vadd.f32 0.0, %v557
        %v559 = vpop.f32.mrb[0].mxu0
        %560 = vdwg.mxu0
        %v562 = vsel %vm459, %v450, 0
        %v565 = vsel %vm459, %v451, 0
        %v568 = vsel %vm459, %v452, 0
        %v571 = vsel %vm459, %v453, 0
        %v574 = vsel %vm472, %v449, 0
        %576 = vmatprep.subr.mxu0 0.0
        %577 = vmatpush1.msra.mxu0 %v574
        %578 = vmatprep.subr.mxu0 0.0
        %579 = vmatpush1.msra.mxu0 0.0
        %580 = vmatprep.subr.mxu0 0.0
        %581 = vmatpush1.msra.mxu0 0.0
        %582 = vmatprep.subr.mxu0 0.0
        %583 = vmatpush1.msra.mxu0 0.0
        %584 = vmatprep.subr.mxu0 0.0
        %585 = vmatpush1.msra.mxu0 0.0
        %586 = vmatprep.subr.mxu0 0.0
        %587 = vmatpush1.msra.mxu0 0.0
        %588 = vmatprep.subr.mxu0 0.0
        %589 = vmatpush1.msra.mxu0 0.0
        %590 = vmatprep.subr.mxu0 0.0
        %591 = vmatpush1.msra.mxu0 0.0
        %592 = vmatprep.subr.mxu0 0.0
        %593 = vmatpush1.msra.mxu0 0.0
        %594 = vmatprep.subr.mxu0 0.0
        %595 = vmatpush1.msra.mxu0 0.0
        %596 = vmatprep.subr.mxu0 0.0
        %597 = vmatpush1.msra.mxu0 0.0
        %598 = vmatprep.subr.mxu0 0.0
        %599 = vmatpush1.msra.mxu0 0.0
        %600 = vmatprep.subr.mxu0 0.0
        %601 = vmatpush1.msra.mxu0 0.0
        %602 = vmatprep.subr.mxu0 0.0
        %603 = vmatpush1.msra.mxu0 0.0
        %604 = vmatprep.subr.mxu0 0.0
        %605 = vmatpush1.msra.mxu0 0.0
        %606 = vmatprep.subr.mxu0 0.0
        %607 = vmatpush1.msra.mxu0 0.0
        %608 = vmatprep.subr.mxu0 0.0
        %609 = vmatpush1.msra.mxu0 0.0
        %610 = vmatprep.subr.mxu0 0.0
        %611 = vmatpush1.msra.mxu0 0.0
        %612 = vmatprep.subr.mxu0 0.0
        %613 = vmatpush1.msra.mxu0 0.0
        %614 = vmatprep.subr.mxu0 0.0
        %615 = vmatpush1.msra.mxu0 0.0
        %616 = vmatprep.subr.mxu0 0.0
        %617 = vmatpush1.msra.mxu0 0.0
        %618 = vmatprep.subr.mxu0 0.0
        %619 = vmatpush1.msra.mxu0 0.0
        %620 = vmatprep.subr.mxu0 0.0
        %621 = vmatpush1.msra.mxu0 0.0
        %622 = vmatprep.subr.mxu0 0.0
        %623 = vmatpush1.msra.mxu0 0.0
        %624 = vmatprep.subr.mxu0 0.0
        %625 = vmatpush1.msra.mxu0 0.0
        %626 = vmatprep.subr.mxu0 0.0
        %627 = vmatpush1.msra.mxu0 0.0
        %628 = vmatprep.subr.mxu0 0.0
        %629 = vmatpush1.msra.mxu0 0.0
        %630 = vmatprep.subr.mxu0 0.0
        %631 = vmatpush1.msra.mxu0 0.0
        %632 = vmatprep.subr.mxu0 0.0
        %633 = vmatpush1.msra.mxu0 0.0
        %634 = vmatprep.subr.mxu0 0.0
        %635 = vmatpush1.msra.mxu0 0.0
        %636 = vmatprep.subr.mxu0 0.0
        %637 = vmatpush1.msra.mxu0 0.0
        %638 = vmatprep.subr.mxu0 0.0
        %639 = vmatpush1.msra.mxu0 0.0
        %640 = vmatprep.mubr.f32.mxu0 0.0
        %641 = vmatmul.mubr.f32.gmra.mrb[0].mxu0 %v562
        %v642 = vpop.f32.mrb[0].mxu0
        %v643 = vadd.f32 %v543, %v642
        %v644 = vpop.f32.mrb[0].mxu0
        %645 = vmatprep.mubr.f32.mxu0 0.0
        %646 = vmatmul.mubr.f32.gmra.mrb[0].mxu0 %v565
        %v647 = vpop.f32.mrb[0].mxu0
        %v648 = vadd.f32 %v548, %v647
        %v649 = vpop.f32.mrb[0].mxu0
        %650 = vmatprep.mubr.f32.mxu0 0.0
        %651 = vmatmul.mubr.f32.gmra.mrb[0].mxu0 %v568
        %v652 = vpop.f32.mrb[0].mxu0
        %v653 = vadd.f32 %v553, %v652
        %v654 = vpop.f32.mrb[0].mxu0
        %655 = vmatprep.mubr.f32.mxu0 0.0
        %656 = vmatmul.mubr.f32.gmra.mrb[0].mxu0 %v571
        %v657 = vpop.f32.mrb[0].mxu0
        %v658 = vadd.f32 %v558, %v657
        %v659 = vpop.f32.mrb[0].mxu0
        %660 = vdwg.mxu0
        %vm661 = vcmp.lt.s32.totalorder %v426, 15
        %v662 = vsel %vm661, 1, 0
        %vm663 = vcmp.eq.s32.totalorder %v662, 1
        %664 = vrot.lane.b32.xlu0 %v441, 127
        %v665 = vpop.permute.xlu0 %664
        %v667 = vsel %vm663, %v665, 0.0
        %s668 = scalar_lea.vmem %s2, 64
        %v669 = vld [vmem:[%s668] sm:$0xff]
        %v670 = vld [vmem:[%s668 + $0x8] sm:$0xff]
        %v671 = vld [vmem:[%s668 + $0x10] sm:$0xff]
        %v672 = vld [vmem:[%s668 + $0x18] sm:$0xff]
        %v674 = vsel %vm459, %v669, 0
        %v677 = vsel %vm459, %v670, 0
        %v680 = vsel %vm459, %v671, 0
        %v683 = vsel %vm459, %v672, 0
        %v686 = vsel %vm472, %v667, 0
        %688 = vmatprep.subr.mxu0 0.0
        %689 = vmatpush1.msra.mxu0 %v686
        %690 = vmatprep.subr.mxu0 0.0
        %691 = vmatpush1.msra.mxu0 0.0
        %692 = vmatprep.subr.mxu0 0.0
        %693 = vmatpush1.msra.mxu0 0.0
        %694 = vmatprep.subr.mxu0 0.0
        %695 = vmatpush1.msra.mxu0 0.0
        %696 = vmatprep.subr.mxu0 0.0
        %697 = vmatpush1.msra.mxu0 0.0
        %698 = vmatprep.subr.mxu0 0.0
        %699 = vmatpush1.msra.mxu0 0.0
        %700 = vmatprep.subr.mxu0 0.0
        %701 = vmatpush1.msra.mxu0 0.0
        %702 = vmatprep.subr.mxu0 0.0
        %703 = vmatpush1.msra.mxu0 0.0
        %704 = vmatprep.subr.mxu0 0.0
        %705 = vmatpush1.msra.mxu0 0.0
        %706 = vmatprep.subr.mxu0 0.0
        %707 = vmatpush1.msra.mxu0 0.0
        %708 = vmatprep.subr.mxu0 0.0
        %709 = vmatpush1.msra.mxu0 0.0
        %710 = vmatprep.subr.mxu0 0.0
        %711 = vmatpush1.msra.mxu0 0.0
        %712 = vmatprep.subr.mxu0 0.0
        %713 = vmatpush1.msra.mxu0 0.0
        %714 = vmatprep.subr.mxu0 0.0
        %715 = vmatpush1.msra.mxu0 0.0
        %716 = vmatprep.subr.mxu0 0.0
        %717 = vmatpush1.msra.mxu0 0.0
        %718 = vmatprep.subr.mxu0 0.0
        %719 = vmatpush1.msra.mxu0 0.0
        %720 = vmatprep.subr.mxu0 0.0
        %721 = vmatpush1.msra.mxu0 0.0
        %722 = vmatprep.subr.mxu0 0.0
        %723 = vmatpush1.msra.mxu0 0.0
        %724 = vmatprep.subr.mxu0 0.0
        %725 = vmatpush1.msra.mxu0 0.0
        %726 = vmatprep.subr.mxu0 0.0
        %727 = vmatpush1.msra.mxu0 0.0
        %728 = vmatprep.subr.mxu0 0.0
        %729 = vmatpush1.msra.mxu0 0.0
        %730 = vmatprep.subr.mxu0 0.0
        %731 = vmatpush1.msra.mxu0 0.0
        %732 = vmatprep.subr.mxu0 0.0
        %733 = vmatpush1.msra.mxu0 0.0
        %734 = vmatprep.subr.mxu0 0.0
        %735 = vmatpush1.msra.mxu0 0.0
        %736 = vmatprep.subr.mxu0 0.0
        %737 = vmatpush1.msra.mxu0 0.0
        %738 = vmatprep.subr.mxu0 0.0
        %739 = vmatpush1.msra.mxu0 0.0
        %740 = vmatprep.subr.mxu0 0.0
        %741 = vmatpush1.msra.mxu0 0.0
        %742 = vmatprep.subr.mxu0 0.0
        %743 = vmatpush1.msra.mxu0 0.0
        %744 = vmatprep.subr.mxu0 0.0
        %745 = vmatpush1.msra.mxu0 0.0
        %746 = vmatprep.subr.mxu0 0.0
        %747 = vmatpush1.msra.mxu0 0.0
        %748 = vmatprep.subr.mxu0 0.0
        %749 = vmatpush1.msra.mxu0 0.0
        %750 = vmatprep.subr.mxu0 0.0
        %751 = vmatpush1.msra.mxu0 0.0
        %752 = vmatprep.mubr.f32.mxu0 0.0
        %753 = vmatmul.mubr.f32.gmra.mrb[0].mxu0 %v674
        %v754 = vpop.f32.mrb[0].mxu0
        %v755 = vadd.f32 0.0, %v754
        %v756 = vpop.f32.mrb[0].mxu0
        %757 = vmatprep.mubr.f32.mxu0 0.0
        %758 = vmatmul.mubr.f32.gmra.mrb[0].mxu0 %v677
        %v759 = vpop.f32.mrb[0].mxu0
        %v760 = vadd.f32 0.0, %v759
        %v761 = vpop.f32.mrb[0].mxu0
        %762 = vmatprep.mubr.f32.mxu0 0.0
        %763 = vmatmul.mubr.f32.gmra.mrb[0].mxu0 %v680
        %v764 = vpop.f32.mrb[0].mxu0
        %v765 = vadd.f32 0.0, %v764
        %v766 = vpop.f32.mrb[0].mxu0
        %767 = vmatprep.mubr.f32.mxu0 0.0
        %768 = vmatmul.mubr.f32.gmra.mrb[0].mxu0 %v683
        %v769 = vpop.f32.mrb[0].mxu0
        %v770 = vadd.f32 0.0, %v769
        %v771 = vpop.f32.mrb[0].mxu0
        %772 = vdwg.mxu0
        %v773 = vadd.f32 %v643, %v755
        %v774 = vadd.f32 %v648, %v760
        %v775 = vadd.f32 %v653, %v765
        %v776 = vadd.f32 %v658, %v770
        %v777 = vld [vmem:[%s3] sm:$0xff]
        %v778 = vld [vmem:[%s3 + $0x8] sm:$0xff]
        %v779 = vld [vmem:[%s3 + $0x10] sm:$0xff]
        %v780 = vld [vmem:[%s3 + $0x18] sm:$0xff]
        %782 = vset.pattern.permute.xlu0 0
        %783 = vperm.xlu0 %782, %v777
        %v784 = vpop.permute.xlu0 %783
        %787 = vset.pattern.permute.xlu0 0
        %788 = vperm.xlu0 %787, %v778
        %v789 = vpop.permute.xlu0 %788
        %792 = vset.pattern.permute.xlu0 0
        %793 = vperm.xlu0 %792, %v779
        %v794 = vpop.permute.xlu0 %793
        %797 = vset.pattern.permute.xlu0 0
        %798 = vperm.xlu0 %797, %v780
        %v799 = vpop.permute.xlu0 %798
        %v801 = vadd.f32 %v773, %v784
        %v802 = vadd.f32 %v774, %v789
        %v803 = vadd.f32 %v775, %v794
        %v804 = vadd.f32 %v776, %v799
        %v805 = vmax.f32 %v801, 0.0
        %v806 = vmax.f32 %v802, 0.0
        %v807 = vmax.f32 %v803, 0.0
        %v808 = vmax.f32 %v804, 0.0
        %vm809 = vcmask 130048
        %v810 = vsel %vm809, %v805, 0.0
        %v811 = vsel %vm809, %v806, 0.0
        %v812 = vadd.f32 %v810, %v811
        %v813 = vsel %vm809, %v807, 0.0
        %v814 = vadd.f32 %v812, %v813
        %v815 = vsel %vm809, %v808, 0.0
        %v816 = vadd.f32 %v814, %v815
        %v817 = vrot.slane %v816, 4
        %v818 = vadd.f32 %v816, %v817
        %v819 = vrot.slane %v818, 2
        %v820 = vadd.f32 %v818, %v819
        %v821 = vrot.slane %v820, 1
        %v822 = vadd.f32 %v820, %v821
        %v823 = vmul.f32 %v822, 0.03125
        %v824 = vmul.f32 %v805, %v805
        %v825 = vmul.f32 %v806, %v806
        %v826 = vmul.f32 %v807, %v807
        %v827 = vmul.f32 %v808, %v808
        %v828 = vsel %vm809, %v824, 0.0
        %v829 = vsel %vm809, %v825, 0.0
        %v830 = vadd.f32 %v828, %v829
        %v831 = vsel %vm809, %v826, 0.0
        %v832 = vadd.f32 %v830, %v831
        %v833 = vsel %vm809, %v827, 0.0
        %v834 = vadd.f32 %v832, %v833
        %v835 = vrot.slane %v834, 4
        %v836 = vadd.f32 %v834, %v835
        %v837 = vrot.slane %v836, 2
        %v838 = vadd.f32 %v836, %v837
        %v839 = vrot.slane %v838, 1
        %v840 = vadd.f32 %v838, %v839
        %v841 = vmul.f32 %v840, 0.03125
        %v842 = vmul.f32 %v823, %v823
        %v843 = vsub.f32 %v841, %v842
        %v844 = vsub.f32 %v805, %v823
        %v845 = vsub.f32 %v806, %v823
        %v846 = vsub.f32 %v807, %v823
        %v847 = vsub.f32 %v808, %v823
        %v848 = vadd.f32 %v843, 0.0001
        %v849 = vrsqrt.pop %v848
        %v850 = vmul.f32 %v844, %v849
        %v851 = vmul.f32 %v845, %v849
        %v852 = vmul.f32 %v846, %v849
        %v853 = vmul.f32 %v847, %v849
        %v854 = vld [vmem:[%s4] sm:$0xff]
        %v855 = vld [vmem:[%s4 + $0x8] sm:$0xff]
        %v856 = vld [vmem:[%s4 + $0x10] sm:$0xff]
        %v857 = vld [vmem:[%s4 + $0x18] sm:$0xff]
        %859 = vset.pattern.permute.xlu0 0
        %860 = vperm.xlu0 %859, %v854
        %v861 = vpop.permute.xlu0 %860
        %864 = vset.pattern.permute.xlu0 0
        %865 = vperm.xlu0 %864, %v855
        %v866 = vpop.permute.xlu0 %865
        %869 = vset.pattern.permute.xlu0 0
        %870 = vperm.xlu0 %869, %v856
        %v871 = vpop.permute.xlu0 %870
        %874 = vset.pattern.permute.xlu0 0
        %875 = vperm.xlu0 %874, %v857
        %v876 = vpop.permute.xlu0 %875
        %v878 = vmul.f32 %v850, %v861
        %v879 = vmul.f32 %v851, %v866
        %v880 = vmul.f32 %v852, %v871
        %v881 = vmul.f32 %v853, %v876
        %v882 = vld [vmem:[%s5] sm:$0xff]
        %v883 = vld [vmem:[%s5 + $0x8] sm:$0xff]
        %v884 = vld [vmem:[%s5 + $0x10] sm:$0xff]
        %v885 = vld [vmem:[%s5 + $0x18] sm:$0xff]
        %887 = vset.pattern.permute.xlu0 0
        %888 = vperm.xlu0 %887, %v882
        %v889 = vpop.permute.xlu0 %888
        %892 = vset.pattern.permute.xlu0 0
        %893 = vperm.xlu0 %892, %v883
        %v894 = vpop.permute.xlu0 %893
        %897 = vset.pattern.permute.xlu0 0
        %898 = vperm.xlu0 %897, %v884
        %v899 = vpop.permute.xlu0 %898
        %902 = vset.pattern.permute.xlu0 0
        %903 = vperm.xlu0 %902, %v885
        %v904 = vpop.permute.xlu0 %903
        %v906 = vadd.f32 %v878, %v889
        %v907 = vadd.f32 %v879, %v894
        %v908 = vadd.f32 %v880, %v899
        %v909 = vadd.f32 %v881, %v904
        %v910 = vmul.f32 %v906, %v432
        %v911 = vmul.f32 %v907, %v432
        %v912 = vmul.f32 %v908, %v432
        %v913 = vmul.f32 %v909, %v432
        %914 = vrot.lane.b32.xlu0 %v910, 16
        %v915 = vpop.permute.xlu0 %914
        %v916 = vsel %vm435, %v915, %v910
        %917 = vrot.lane.b32.xlu0 %v911, 16
        %v918 = vpop.permute.xlu0 %917
        %v919 = vsel %vm435, %v918, %v911
        %920 = vrot.lane.b32.xlu0 %v912, 16
        %v921 = vpop.permute.xlu0 %920
        %v922 = vsel %vm435, %v921, %v912
        %923 = vrot.lane.b32.xlu0 %v913, 16
        %v924 = vpop.permute.xlu0 %923
        %v925 = vsel %vm435, %v924, %v913
        %926 = vrot.lane.b32.xlu0 %v916, 16
        %v927 = vpop.permute.xlu0 %926
        %928 = vrot.lane.b32.xlu0 %v919, 16
        %v929 = vpop.permute.xlu0 %928
        %930 = vrot.lane.b32.xlu0 %v922, 16
        %v931 = vpop.permute.xlu0 %930
        %932 = vrot.lane.b32.xlu0 %v925, 16
        %v933 = vpop.permute.xlu0 %932
        %v934 = vsel %vm435, %v927, %v910
        %v935 = vsel %vm435, %v929, %v911
        %v936 = vsel %vm435, %v931, %v912
        %v937 = vsel %vm435, %v933, %v913
        %942 = vrot.lane.b32.xlu0 %v934, 113
        %v943 = vpop.permute.xlu0 %942
        %944 = vrot.lane.b32.xlu0 %v935, 113
        %v945 = vpop.permute.xlu0 %944
        %946 = vrot.lane.b32.xlu0 %v936, 113
        %v947 = vpop.permute.xlu0 %946
        %948 = vrot.lane.b32.xlu0 %v937, 113
        %v949 = vpop.permute.xlu0 %948
        %v954 = vsel %vm444, %v943, 0.0
        %v955 = vsel %vm444, %v945, 0.0
        %v956 = vsel %vm444, %v947, 0.0
        %v957 = vsel %vm444, %v949, 0.0
        %v958 = vld [vmem:[%s6] sm:$0xff]
        %v959 = vld [vmem:[%s6 + $0x8] sm:$0xff]
        %v960 = vld [vmem:[%s6 + $0x10] sm:$0xff]
        %v961 = vld [vmem:[%s6 + $0x18] sm:$0xff]
        %s962 = scalar_lea.vmem %s6, 32
        %v963 = vld [vmem:[%s962] sm:$0xff]
        %v964 = vld [vmem:[%s962 + $0x8] sm:$0xff]
        %v965 = vld [vmem:[%s962 + $0x10] sm:$0xff]
        %v966 = vld [vmem:[%s962 + $0x18] sm:$0xff]
        %vm967 = vcmask 261120
        %v969 = vsel %vm967, %v963, 0
        %v972 = vsel %vm967, %v964, 0
        %v975 = vsel %vm967, %v965, 0
        %v978 = vsel %vm967, %v966, 0
        %980 = vmatprep.subr.mxu0 0.0
        %981 = vmatpush1.msra.mxu0 %v910
        %982 = vmatprep.subr.mxu0 0.0
        %983 = vmatpush1.msra.mxu0 %v911
        %984 = vmatprep.subr.mxu0 0.0
        %985 = vmatpush1.msra.mxu0 %v912
        %986 = vmatprep.subr.mxu0 0.0
        %987 = vmatpush1.msra.mxu0 %v913
        %988 = vmatprep.subr.mxu0 0.0
        %989 = vmatpush1.msra.mxu0 0.0
        %990 = vmatprep.subr.mxu0 0.0
        %991 = vmatpush1.msra.mxu0 0.0
        %992 = vmatprep.subr.mxu0 0.0
        %993 = vmatpush1.msra.mxu0 0.0
        %994 = vmatprep.subr.mxu0 0.0
        %995 = vmatpush1.msra.mxu0 0.0
        %996 = vmatprep.subr.mxu0 0.0
        %997 = vmatpush1.msra.mxu0 0.0
        %998 = vmatprep.subr.mxu0 0.0
        %999 = vmatpush1.msra.mxu0 0.0
        %1000 = vmatprep.subr.mxu0 0.0
        %1001 = vmatpush1.msra.mxu0 0.0
        %1002 = vmatprep.subr.mxu0 0.0
        %1003 = vmatpush1.msra.mxu0 0.0
        %1004 = vmatprep.subr.mxu0 0.0
        %1005 = vmatpush1.msra.mxu0 0.0
        %1006 = vmatprep.subr.mxu0 0.0
        %1007 = vmatpush1.msra.mxu0 0.0
        %1008 = vmatprep.subr.mxu0 0.0
        %1009 = vmatpush1.msra.mxu0 0.0
        %1010 = vmatprep.subr.mxu0 0.0
        %1011 = vmatpush1.msra.mxu0 0.0
        %1012 = vmatprep.subr.mxu0 0.0
        %1013 = vmatpush1.msra.mxu0 0.0
        %1014 = vmatprep.subr.mxu0 0.0
        %1015 = vmatpush1.msra.mxu0 0.0
        %1016 = vmatprep.subr.mxu0 0.0
        %1017 = vmatpush1.msra.mxu0 0.0
        %1018 = vmatprep.subr.mxu0 0.0
        %1019 = vmatpush1.msra.mxu0 0.0
        %1020 = vmatprep.subr.mxu0 0.0
        %1021 = vmatpush1.msra.mxu0 0.0
        %1022 = vmatprep.subr.mxu0 0.0
        %1023 = vmatpush1.msra.mxu0 0.0
        %1024 = vmatprep.subr.mxu0 0.0
        %1025 = vmatpush1.msra.mxu0 0.0
        %1026 = vmatprep.subr.mxu0 0.0
        %1027 = vmatpush1.msra.mxu0 0.0
        %1028 = vmatprep.subr.mxu0 0.0
        %1029 = vmatpush1.msra.mxu0 0.0
        %1030 = vmatprep.subr.mxu0 0.0
        %1031 = vmatpush1.msra.mxu0 0.0
        %1032 = vmatprep.subr.mxu0 0.0
        %1033 = vmatpush1.msra.mxu0 0.0
        %1034 = vmatprep.subr.mxu0 0.0
        %1035 = vmatpush1.msra.mxu0 0.0
        %1036 = vmatprep.subr.mxu0 0.0
        %1037 = vmatpush1.msra.mxu0 0.0
        %1038 = vmatprep.subr.mxu0 0.0
        %1039 = vmatpush1.msra.mxu0 0.0
        %1040 = vmatprep.subr.mxu0 0.0
        %1041 = vmatpush1.msra.mxu0 0.0
        %1042 = vmatprep.subr.mxu0 0.0
        %1043 = vmatpush1.msra.mxu0 0.0
        %1044 = vmatprep.mubr.f32.mxu0 0.0
        %1045 = vmatmul.mubr.f32.gmra.mrb[0].mxu0 %v969
        %v1046 = vpop.f32.mrb[0].mxu0
        %v1047 = vadd.f32 0.0, %v1046
        %v1048 = vpop.f32.mrb[0].mxu0
        %1049 = vmatprep.mubr.f32.mxu0 0.0
        %1050 = vmatmul.mubr.f32.gmra.mrb[0].mxu0 %v972
        %v1051 = vpop.f32.mrb[0].mxu0
        %v1052 = vadd.f32 0.0, %v1051
        %v1053 = vpop.f32.mrb[0].mxu0
        %1054 = vmatprep.mubr.f32.mxu0 0.0
        %1055 = vmatmul.mubr.f32.gmra.mrb[0].mxu0 %v975
        %v1056 = vpop.f32.mrb[0].mxu0
        %v1057 = vadd.f32 0.0, %v1056
        %v1058 = vpop.f32.mrb[0].mxu0
        %1059 = vmatprep.mubr.f32.mxu0 0.0
        %1060 = vmatmul.mubr.f32.gmra.mrb[0].mxu0 %v978
        %v1061 = vpop.f32.mrb[0].mxu0
        %v1062 = vadd.f32 0.0, %v1061
        %v1063 = vpop.f32.mrb[0].mxu0
        %1064 = vdwg.mxu0
        %v1066 = vsel %vm967, %v958, 0
        %v1069 = vsel %vm967, %v959, 0
        %v1072 = vsel %vm967, %v960, 0
        %v1075 = vsel %vm967, %v961, 0
        %1077 = vmatprep.subr.mxu0 0.0
        %1078 = vmatpush1.msra.mxu0 %v954
        %1079 = vmatprep.subr.mxu0 0.0
        %1080 = vmatpush1.msra.mxu0 %v955
        %1081 = vmatprep.subr.mxu0 0.0
        %1082 = vmatpush1.msra.mxu0 %v956
        %1083 = vmatprep.subr.mxu0 0.0
        %1084 = vmatpush1.msra.mxu0 %v957
        %1085 = vmatprep.subr.mxu0 0.0
        %1086 = vmatpush1.msra.mxu0 0.0
        %1087 = vmatprep.subr.mxu0 0.0
        %1088 = vmatpush1.msra.mxu0 0.0
        %1089 = vmatprep.subr.mxu0 0.0
        %1090 = vmatpush1.msra.mxu0 0.0
        %1091 = vmatprep.subr.mxu0 0.0
        %1092 = vmatpush1.msra.mxu0 0.0
        %1093 = vmatprep.subr.mxu0 0.0
        %1094 = vmatpush1.msra.mxu0 0.0
        %1095 = vmatprep.subr.mxu0 0.0
        %1096 = vmatpush1.msra.mxu0 0.0
        %1097 = vmatprep.subr.mxu0 0.0
        %1098 = vmatpush1.msra.mxu0 0.0
        %1099 = vmatprep.subr.mxu0 0.0
        %1100 = vmatpush1.msra.mxu0 0.0
        %1101 = vmatprep.subr.mxu0 0.0
        %1102 = vmatpush1.msra.mxu0 0.0
        %1103 = vmatprep.subr.mxu0 0.0
        %1104 = vmatpush1.msra.mxu0 0.0
        %1105 = vmatprep.subr.mxu0 0.0
        %1106 = vmatpush1.msra.mxu0 0.0
        %1107 = vmatprep.subr.mxu0 0.0
        %1108 = vmatpush1.msra.mxu0 0.0
        %1109 = vmatprep.subr.mxu0 0.0
        %1110 = vmatpush1.msra.mxu0 0.0
        %1111 = vmatprep.subr.mxu0 0.0
        %1112 = vmatpush1.msra.mxu0 0.0
        %1113 = vmatprep.subr.mxu0 0.0
        %1114 = vmatpush1.msra.mxu0 0.0
        %1115 = vmatprep.subr.mxu0 0.0
        %1116 = vmatpush1.msra.mxu0 0.0
        %1117 = vmatprep.subr.mxu0 0.0
        %1118 = vmatpush1.msra.mxu0 0.0
        %1119 = vmatprep.subr.mxu0 0.0
        %1120 = vmatpush1.msra.mxu0 0.0
        %1121 = vmatprep.subr.mxu0 0.0
        %1122 = vmatpush1.msra.mxu0 0.0
        %1123 = vmatprep.subr.mxu0 0.0
        %1124 = vmatpush1.msra.mxu0 0.0
        %1125 = vmatprep.subr.mxu0 0.0
        %1126 = vmatpush1.msra.mxu0 0.0
        %1127 = vmatprep.subr.mxu0 0.0
        %1128 = vmatpush1.msra.mxu0 0.0
        %1129 = vmatprep.subr.mxu0 0.0
        %1130 = vmatpush1.msra.mxu0 0.0
        %1131 = vmatprep.subr.mxu0 0.0
        %1132 = vmatpush1.msra.mxu0 0.0
        %1133 = vmatprep.subr.mxu0 0.0
        %1134 = vmatpush1.msra.mxu0 0.0
        %1135 = vmatprep.subr.mxu0 0.0
        %1136 = vmatpush1.msra.mxu0 0.0
        %1137 = vmatprep.subr.mxu0 0.0
        %1138 = vmatpush1.msra.mxu0 0.0
        %1139 = vmatprep.subr.mxu0 0.0
        %1140 = vmatpush1.msra.mxu0 0.0
        %1141 = vmatprep.mubr.f32.mxu0 0.0
        %1142 = vmatmul.mubr.f32.gmra.mrb[0].mxu0 %v1066
        %v1143 = vpop.f32.mrb[0].mxu0
        %v1144 = vadd.f32 %v1047, %v1143
        %v1145 = vpop.f32.mrb[0].mxu0
        %1146 = vmatprep.mubr.f32.mxu0 0.0
        %1147 = vmatmul.mubr.f32.gmra.mrb[0].mxu0 %v1069
        %v1148 = vpop.f32.mrb[0].mxu0
        %v1149 = vadd.f32 %v1052, %v1148
        %v1150 = vpop.f32.mrb[0].mxu0
        %1151 = vmatprep.mubr.f32.mxu0 0.0
        %1152 = vmatmul.mubr.f32.gmra.mrb[0].mxu0 %v1072
        %v1153 = vpop.f32.mrb[0].mxu0
        %v1154 = vadd.f32 %v1057, %v1153
        %v1155 = vpop.f32.mrb[0].mxu0
        %1156 = vmatprep.mubr.f32.mxu0 0.0
        %1157 = vmatmul.mubr.f32.gmra.mrb[0].mxu0 %v1075
        %v1158 = vpop.f32.mrb[0].mxu0
        %v1159 = vadd.f32 %v1062, %v1158
        %v1160 = vpop.f32.mrb[0].mxu0
        %1161 = vdwg.mxu0
        %1162 = vrot.lane.b32.xlu0 %v934, 127
        %v1163 = vpop.permute.xlu0 %1162
        %1164 = vrot.lane.b32.xlu0 %v935, 127
        %v1165 = vpop.permute.xlu0 %1164
        %1166 = vrot.lane.b32.xlu0 %v936, 127
        %v1167 = vpop.permute.xlu0 %1166
        %1168 = vrot.lane.b32.xlu0 %v937, 127
        %v1169 = vpop.permute.xlu0 %1168
        %v1174 = vsel %vm663, %v1163, 0.0
        %v1175 = vsel %vm663, %v1165, 0.0
        %v1176 = vsel %vm663, %v1167, 0.0
        %v1177 = vsel %vm663, %v1169, 0.0
        %s1178 = scalar_lea.vmem %s6, 64
        %v1179 = vld [vmem:[%s1178] sm:$0xff]
        %v1180 = vld [vmem:[%s1178 + $0x8] sm:$0xff]
        %v1181 = vld [vmem:[%s1178 + $0x10] sm:$0xff]
        %v1182 = vld [vmem:[%s1178 + $0x18] sm:$0xff]
        %v1184 = vsel %vm967, %v1179, 0
        %v1187 = vsel %vm967, %v1180, 0
        %v1190 = vsel %vm967, %v1181, 0
        %v1193 = vsel %vm967, %v1182, 0
        %1195 = vmatprep.subr.mxu0 0.0
        %1196 = vmatpush1.msra.mxu0 %v1174
        %1197 = vmatprep.subr.mxu0 0.0
        %1198 = vmatpush1.msra.mxu0 %v1175
        %1199 = vmatprep.subr.mxu0 0.0
        %1200 = vmatpush1.msra.mxu0 %v1176
        %1201 = vmatprep.subr.mxu0 0.0
        %1202 = vmatpush1.msra.mxu0 %v1177
        %1203 = vmatprep.subr.mxu0 0.0
        %1204 = vmatpush1.msra.mxu0 0.0
        %1205 = vmatprep.subr.mxu0 0.0
        %1206 = vmatpush1.msra.mxu0 0.0
        %1207 = vmatprep.subr.mxu0 0.0
        %1208 = vmatpush1.msra.mxu0 0.0
        %1209 = vmatprep.subr.mxu0 0.0
        %1210 = vmatpush1.msra.mxu0 0.0
        %1211 = vmatprep.subr.mxu0 0.0
        %1212 = vmatpush1.msra.mxu0 0.0
        %1213 = vmatprep.subr.mxu0 0.0
        %1214 = vmatpush1.msra.mxu0 0.0
        %1215 = vmatprep.subr.mxu0 0.0
        %1216 = vmatpush1.msra.mxu0 0.0
        %1217 = vmatprep.subr.mxu0 0.0
        %1218 = vmatpush1.msra.mxu0 0.0
        %1219 = vmatprep.subr.mxu0 0.0
        %1220 = vmatpush1.msra.mxu0 0.0
        %1221 = vmatprep.subr.mxu0 0.0
        %1222 = vmatpush1.msra.mxu0 0.0
        %1223 = vmatprep.subr.mxu0 0.0
        %1224 = vmatpush1.msra.mxu0 0.0
        %1225 = vmatprep.subr.mxu0 0.0
        %1226 = vmatpush1.msra.mxu0 0.0
        %1227 = vmatprep.subr.mxu0 0.0
        %1228 = vmatpush1.msra.mxu0 0.0
        %1229 = vmatprep.subr.mxu0 0.0
        %1230 = vmatpush1.msra.mxu0 0.0
        %1231 = vmatprep.subr.mxu0 0.0
        %1232 = vmatpush1.msra.mxu0 0.0
        %1233 = vmatprep.subr.mxu0 0.0
        %1234 = vmatpush1.msra.mxu0 0.0
        %1235 = vmatprep.subr.mxu0 0.0
        %1236 = vmatpush1.msra.mxu0 0.0
        %1237 = vmatprep.subr.mxu0 0.0
        %1238 = vmatpush1.msra.mxu0 0.0
        %1239 = vmatprep.subr.mxu0 0.0
        %1240 = vmatpush1.msra.mxu0 0.0
        %1241 = vmatprep.subr.mxu0 0.0
        %1242 = vmatpush1.msra.mxu0 0.0
        %1243 = vmatprep.subr.mxu0 0.0
        %1244 = vmatpush1.msra.mxu0 0.0
        %1245 = vmatprep.subr.mxu0 0.0
        %1246 = vmatpush1.msra.mxu0 0.0
        %1247 = vmatprep.subr.mxu0 0.0
        %1248 = vmatpush1.msra.mxu0 0.0
        %1249 = vmatprep.subr.mxu0 0.0
        %1250 = vmatpush1.msra.mxu0 0.0
        %1251 = vmatprep.subr.mxu0 0.0
        %1252 = vmatpush1.msra.mxu0 0.0
        %1253 = vmatprep.subr.mxu0 0.0
        %1254 = vmatpush1.msra.mxu0 0.0
        %1255 = vmatprep.subr.mxu0 0.0
        %1256 = vmatpush1.msra.mxu0 0.0
        %1257 = vmatprep.subr.mxu0 0.0
        %1258 = vmatpush1.msra.mxu0 0.0
        %1259 = vmatprep.mubr.f32.mxu0 0.0
        %1260 = vmatmul.mubr.f32.gmra.mrb[0].mxu0 %v1184
        %v1261 = vpop.f32.mrb[0].mxu0
        %v1262 = vadd.f32 0.0, %v1261
        %v1263 = vpop.f32.mrb[0].mxu0
        %1264 = vmatprep.mubr.f32.mxu0 0.0
        %1265 = vmatmul.mubr.f32.gmra.mrb[0].mxu0 %v1187
        %v1266 = vpop.f32.mrb[0].mxu0
        %v1267 = vadd.f32 0.0, %v1266
        %v1268 = vpop.f32.mrb[0].mxu0
        %1269 = vmatprep.mubr.f32.mxu0 0.0
        %1270 = vmatmul.mubr.f32.gmra.mrb[0].mxu0 %v1190
        %v1271 = vpop.f32.mrb[0].mxu0
        %v1272 = vadd.f32 0.0, %v1271
        %v1273 = vpop.f32.mrb[0].mxu0
        %1274 = vmatprep.mubr.f32.mxu0 0.0
        %1275 = vmatmul.mubr.f32.gmra.mrb[0].mxu0 %v1193
        %v1276 = vpop.f32.mrb[0].mxu0
        %v1277 = vadd.f32 0.0, %v1276
        %v1278 = vpop.f32.mrb[0].mxu0
        %1279 = vdwg.mxu0
        %v1280 = vadd.f32 %v1144, %v1262
        %v1281 = vadd.f32 %v1149, %v1267
        %v1282 = vadd.f32 %v1154, %v1272
        %v1283 = vadd.f32 %v1159, %v1277
        %v1284 = vld [vmem:[%s7] sm:$0xff]
        %v1285 = vld [vmem:[%s7 + $0x8] sm:$0xff]
        %v1286 = vld [vmem:[%s7 + $0x10] sm:$0xff]
        %v1287 = vld [vmem:[%s7 + $0x18] sm:$0xff]
        %1289 = vset.pattern.permute.xlu0 0
        %1290 = vperm.xlu0 %1289, %v1284
        %v1291 = vpop.permute.xlu0 %1290
        %1294 = vset.pattern.permute.xlu0 0
        %1295 = vperm.xlu0 %1294, %v1285
        %v1296 = vpop.permute.xlu0 %1295
        %1299 = vset.pattern.permute.xlu0 0
        %1300 = vperm.xlu0 %1299, %v1286
        %v1301 = vpop.permute.xlu0 %1300
        %1304 = vset.pattern.permute.xlu0 0
        %1305 = vperm.xlu0 %1304, %v1287
        %v1306 = vpop.permute.xlu0 %1305
        %v1308 = vadd.f32 %v1280, %v1291
        %v1309 = vadd.f32 %v1281, %v1296
        %v1310 = vadd.f32 %v1282, %v1301
        %v1311 = vadd.f32 %v1283, %v1306
        %v1312 = vmax.f32 %v1308, 0.0
        %v1313 = vmax.f32 %v1309, 0.0
        %v1314 = vmax.f32 %v1310, 0.0
        %v1315 = vmax.f32 %v1311, 0.0
        %v1316 = vsel %vm809, %v1312, 0.0
        %v1317 = vsel %vm809, %v1313, 0.0
        %v1318 = vadd.f32 %v1316, %v1317
        %v1319 = vsel %vm809, %v1314, 0.0
        %v1320 = vadd.f32 %v1318, %v1319
        %v1321 = vsel %vm809, %v1315, 0.0
        %v1322 = vadd.f32 %v1320, %v1321
        %v1323 = vrot.slane %v1322, 4
        %v1324 = vadd.f32 %v1322, %v1323
        %v1325 = vrot.slane %v1324, 2
        %v1326 = vadd.f32 %v1324, %v1325
        %v1327 = vrot.slane %v1326, 1
        %v1328 = vadd.f32 %v1326, %v1327
        %v1329 = vmul.f32 %v1328, 0.03125
        %v1330 = vmul.f32 %v1312, %v1312
        %v1331 = vmul.f32 %v1313, %v1313
        %v1332 = vmul.f32 %v1314, %v1314
        %v1333 = vmul.f32 %v1315, %v1315
        %v1334 = vsel %vm809, %v1330, 0.0
        %v1335 = vsel %vm809, %v1331, 0.0
        %v1336 = vadd.f32 %v1334, %v1335
        %v1337 = vsel %vm809, %v1332, 0.0
        %v1338 = vadd.f32 %v1336, %v1337
        %v1339 = vsel %vm809, %v1333, 0.0
        %v1340 = vadd.f32 %v1338, %v1339
        %v1341 = vrot.slane %v1340, 4
        %v1342 = vadd.f32 %v1340, %v1341
        %v1343 = vrot.slane %v1342, 2
        %v1344 = vadd.f32 %v1342, %v1343
        %v1345 = vrot.slane %v1344, 1
        %v1346 = vadd.f32 %v1344, %v1345
        %v1347 = vmul.f32 %v1346, 0.03125
        %v1348 = vmul.f32 %v1329, %v1329
        %v1349 = vsub.f32 %v1347, %v1348
        %v1350 = vsub.f32 %v1312, %v1329
        %v1351 = vsub.f32 %v1313, %v1329
        %v1352 = vsub.f32 %v1314, %v1329
        %v1353 = vsub.f32 %v1315, %v1329
        %v1354 = vadd.f32 %v1349, 0.0001
        %v1355 = vrsqrt.pop %v1354
        %v1356 = vmul.f32 %v1350, %v1355
        %v1357 = vmul.f32 %v1351, %v1355
        %v1358 = vmul.f32 %v1352, %v1355
        %v1359 = vmul.f32 %v1353, %v1355
        %v1360 = vld [vmem:[%s8] sm:$0xff]
        %v1361 = vld [vmem:[%s8 + $0x8] sm:$0xff]
        %v1362 = vld [vmem:[%s8 + $0x10] sm:$0xff]
        %v1363 = vld [vmem:[%s8 + $0x18] sm:$0xff]
        %1365 = vset.pattern.permute.xlu0 0
        %1366 = vperm.xlu0 %1365, %v1360
        %v1367 = vpop.permute.xlu0 %1366
        %1370 = vset.pattern.permute.xlu0 0
        %1371 = vperm.xlu0 %1370, %v1361
        %v1372 = vpop.permute.xlu0 %1371
        %1375 = vset.pattern.permute.xlu0 0
        %1376 = vperm.xlu0 %1375, %v1362
        %v1377 = vpop.permute.xlu0 %1376
        %1380 = vset.pattern.permute.xlu0 0
        %1381 = vperm.xlu0 %1380, %v1363
        %v1382 = vpop.permute.xlu0 %1381
        %v1384 = vmul.f32 %v1356, %v1367
        %v1385 = vmul.f32 %v1357, %v1372
        %v1386 = vmul.f32 %v1358, %v1377
        %v1387 = vmul.f32 %v1359, %v1382
        %v1388 = vld [vmem:[%s9] sm:$0xff]
        %v1389 = vld [vmem:[%s9 + $0x8] sm:$0xff]
        %v1390 = vld [vmem:[%s9 + $0x10] sm:$0xff]
        %v1391 = vld [vmem:[%s9 + $0x18] sm:$0xff]
        %1393 = vset.pattern.permute.xlu0 0
        %1394 = vperm.xlu0 %1393, %v1388
        %v1395 = vpop.permute.xlu0 %1394
        %1398 = vset.pattern.permute.xlu0 0
        %1399 = vperm.xlu0 %1398, %v1389
        %v1400 = vpop.permute.xlu0 %1399
        %1403 = vset.pattern.permute.xlu0 0
        %1404 = vperm.xlu0 %1403, %v1390
        %v1405 = vpop.permute.xlu0 %1404
        %1408 = vset.pattern.permute.xlu0 0
        %1409 = vperm.xlu0 %1408, %v1391
        %v1410 = vpop.permute.xlu0 %1409
        %v1412 = vadd.f32 %v1384, %v1395
        %v1413 = vadd.f32 %v1385, %v1400
        %v1414 = vadd.f32 %v1386, %v1405
        %v1415 = vadd.f32 %v1387, %v1410
        %v1416 = vmul.f32 %v1412, %v432
        %v1417 = vmul.f32 %v1413, %v432
        %v1418 = vmul.f32 %v1414, %v432
        %v1419 = vmul.f32 %v1415, %v432
        %v1420 = vld [vmem:[%s10] sm:$0x1]
        %v1421 = vld [vmem:[#allocation2] sm:$0x1]
        %1423 = vset.pattern.permute.xlu0 0
        %1424 = vperm.xlu0 %1423, %v1421
        %v1425 = vpop.permute.xlu0 %1424
        %v1427 = vlaneseq
        %v1428 = vshrl.u32 %v1427, 7
        %v1429 = vsub.s32 0, %v1428
        %v1430 = vrot.slane %v1425, %v1429
        %v1432 = vsel %vm967, %v1420, 0
        %1434 = vmatprep.subr.mxu0 0.0
        %1435 = vmatpush1.msra.mxu0 %v1416
        %1436 = vmatprep.subr.mxu0 0.0
        %1437 = vmatpush1.msra.mxu0 %v1417
        %1438 = vmatprep.subr.mxu0 0.0
        %1439 = vmatpush1.msra.mxu0 %v1418
        %1440 = vmatprep.subr.mxu0 0.0
        %1441 = vmatpush1.msra.mxu0 %v1419
        %1442 = vmatprep.subr.mxu0 0.0
        %1443 = vmatpush1.msra.mxu0 0.0
        %1444 = vmatprep.subr.mxu0 0.0
        %1445 = vmatpush1.msra.mxu0 0.0
        %1446 = vmatprep.subr.mxu0 0.0
        %1447 = vmatpush1.msra.mxu0 0.0
        %1448 = vmatprep.subr.mxu0 0.0
        %1449 = vmatpush1.msra.mxu0 0.0
        %1450 = vmatprep.subr.mxu0 0.0
        %1451 = vmatpush1.msra.mxu0 0.0
        %1452 = vmatprep.subr.mxu0 0.0
        %1453 = vmatpush1.msra.mxu0 0.0
        %1454 = vmatprep.subr.mxu0 0.0
        %1455 = vmatpush1.msra.mxu0 0.0
        %1456 = vmatprep.subr.mxu0 0.0
        %1457 = vmatpush1.msra.mxu0 0.0
        %1458 = vmatprep.subr.mxu0 0.0
        %1459 = vmatpush1.msra.mxu0 0.0
        %1460 = vmatprep.subr.mxu0 0.0
        %1461 = vmatpush1.msra.mxu0 0.0
        %1462 = vmatprep.subr.mxu0 0.0
        %1463 = vmatpush1.msra.mxu0 0.0
        %1464 = vmatprep.subr.mxu0 0.0
        %1465 = vmatpush1.msra.mxu0 0.0
        %1466 = vmatprep.subr.mxu0 0.0
        %1467 = vmatpush1.msra.mxu0 0.0
        %1468 = vmatprep.subr.mxu0 0.0
        %1469 = vmatpush1.msra.mxu0 0.0
        %1470 = vmatprep.subr.mxu0 0.0
        %1471 = vmatpush1.msra.mxu0 0.0
        %1472 = vmatprep.subr.mxu0 0.0
        %1473 = vmatpush1.msra.mxu0 0.0
        %1474 = vmatprep.subr.mxu0 0.0
        %1475 = vmatpush1.msra.mxu0 0.0
        %1476 = vmatprep.subr.mxu0 0.0
        %1477 = vmatpush1.msra.mxu0 0.0
        %1478 = vmatprep.subr.mxu0 0.0
        %1479 = vmatpush1.msra.mxu0 0.0
        %1480 = vmatprep.subr.mxu0 0.0
        %1481 = vmatpush1.msra.mxu0 0.0
        %1482 = vmatprep.subr.mxu0 0.0
        %1483 = vmatpush1.msra.mxu0 0.0
        %1484 = vmatprep.subr.mxu0 0.0
        %1485 = vmatpush1.msra.mxu0 0.0
        %1486 = vmatprep.subr.mxu0 0.0
        %1487 = vmatpush1.msra.mxu0 0.0
        %1488 = vmatprep.subr.mxu0 0.0
        %1489 = vmatpush1.msra.mxu0 0.0
        %1490 = vmatprep.subr.mxu0 0.0
        %1491 = vmatpush1.msra.mxu0 0.0
        %1492 = vmatprep.subr.mxu0 0.0
        %1493 = vmatpush1.msra.mxu0 0.0
        %1494 = vmatprep.subr.mxu0 0.0
        %1495 = vmatpush1.msra.mxu0 0.0
        %1496 = vmatprep.subr.mxu0 0.0
        %1497 = vmatpush1.msra.mxu0 0.0
        %1498 = vmatprep.mubr.f32.mxu0 0.0
        %1499 = vmatmul.mubr.f32.gmra.mrb[0].mxu0 %v1432
        %v1500 = vpop.f32.mrb[0].mxu0
        %v1501 = vadd.f32 %v1430, %v1500
        %v1502 = vpop.f32.mrb[0].mxu0
        %1503 = vdwg.mxu0
        %v1504 = vmul.f32 %v1501, %v424
        %vm1505 = vcmask 122880
        %1506 = vst.msk [vmem:[%s416] sm:$0x1] %vm1505, %v1504
        %s1507 = sand.u32 %s298, 1
        %s1508 = scalar_lea.sflag [#allocation4], %s1507
        %s1509 = sand.u32 %s298, 1
        %s1510 = scalar_lea.vmem [#allocation3], %s1509
        // Predicated region
        $region69: #{tpu_custom_call.1} parent=67 // pred_check
          %p1511 = pneg %p308
        $region70: #{tpu_custom_call.1} parent=67 // pred_check_branch
          %1513 = sbr.rel (%p1511) target = $region72
        $region71: #{tpu_custom_call.1} parent=67 // pred_region
          %s1515 = ssub.s32 16, 16
          %1516 = vsyncadd %s1508, %s1515
          %s1517 = smul.addr %s28, 16
          %s1518 = scalar_lea.hbm %s12, %s1517
          %s1520 = sshll.u32 %s1510, 4
          %s1521 = int_to_ptr.vmem [resolvable:$true] %s1520
          %1523 = dma.vmem_to_hbm [thread:$0]  %s1521, 16, %s1518, %s1508
        $region72: #{tpu_custom_call.1} parent=67 // pred_fallthru
          _
      $region68: #{tpu_custom_call.1} parent=5 // pred_fallthru
        _
      %p1524 = scmp.le.s32.totalorder 2, %s23
      // Predicated region
      $region73: #{tpu_custom_call.1} parent=5 // pred_check
        %p1525 = pneg %p1524
      $region74: #{tpu_custom_call.1} parent=5 // pred_check_branch
        %1527 = sbr.rel (%p1525) target = $region76
      $region75: #{tpu_custom_call.1} parent=5 // pred_region
        %s1528 = ssub.s32 %s23, 2
        // Predicated region
        $region77: #{tpu_custom_call.1} parent=75 // pred_check
          %p1529 = pneg %p314
        $region78: #{tpu_custom_call.1} parent=75 // pred_check_branch
          %1531 = sbr.rel (%p1529) target = $region80
        $region79: #{tpu_custom_call.1} parent=75 // pred_region
          %s1532 = sand.u32 %s299, 1
          %s1533 = scalar_lea.sflag [#allocation4], %s1532
          %s1534 = sand.u32 %s299, 1
          %s1535 = scalar_lea.vmem [#allocation3], %s1534
          %1536 = dma.done %s1533, 16
        $region80: #{tpu_custom_call.1} parent=75 // pred_fallthru
          _
      $region76: #{tpu_custom_call.1} parent=5 // pred_fallthru
        _
    $region6: #{tpu_custom_call.1} parent=1 // loop_footer
      %s27 = sadd.s32 1, %s23
    $region7: #{tpu_custom_call.1} parent=1 // loop_footer_branch
      %22 = sbr.rel target = $region3
    $region8: #{tpu_custom_call.1} parent=1 // loop_exit
      _
    %1537 = vsyncpa [#allocation4], 1
    %s1538 = scalar_lea.sflag [#allocation4], 1
    %1539 = vsyncpa %s1538, 1

</llo_original>
